<compile_context>
chip_gen: v5e
topology: v5e:2x2
jax: 0.10.0
libtpu: 0.0.40
codegen_flags: <defaults>
</compile_context>

<pallas_src>
import functools
import math

import jax
import jax.numpy as jnp
from jax import lax
from jax.experimental import pallas as pl
from jax.experimental.pallas import tpu as pltpu

NUM_HEADS = 8
LN_EPS = 1e-5
SEQ = 3  # three modalities stacked as a length-3 sequence


def fusion_kernel(text_ref, quad_ref, attn_ref, wqkv_ref, bqkv_ref, wo_ref, bo_ref,
                  wg_ref, bg_ref, wout_ref, bout_ref, gamma_ref, beta_ref, seg_ref,
                  out_ref, *, hidden, compute_dtype):
    H = hidden
    cd = compute_dtype
    f32 = jnp.float32

    wqkv = wqkv_ref[...]          # [H, 3H]  (compute dtype)
    bqkv = bqkv_ref[...]          # [1, 3H]  f32
    seg = seg_ref[...]            # [H, H]   f32, seg[d,e] = 1/sqrt(hd) if head(d)==head(e)

    # ---- fused QKV projection, one matmul per modality tile (M=TB, K=H, N=3H) ----
    q, k, v = [], [], []
    for x_ref in (text_ref, quad_ref, attn_ref):
        qkv = jnp.dot(x_ref[...].astype(cd), wqkv, preferred_element_type=f32) + bqkv
        q.append(qkv[:, 0:H])
        k.append(qkv[:, H:2 * H])
        v.append(qkv[:, 2 * H:3 * H])

    # ---- attention scores: s[i][j][:, e] = (1/sqrt(hd)) * sum_{d in head(e)} q_i*k_j ----
    # The seg matmul performs the per-head lane-segment reduction AND broadcasts the
    # score back over each head's hd lanes, so everything downstream is element-wise.
    s = [[jnp.dot(q[i] * k[j], seg, preferred_element_type=f32)
          for j in range(SEQ)] for i in range(SEQ)]

    wo = wo_ref[...]              # [H, H]
    bo = bo_ref[...]              # [1, H] f32
    attended = []                 # attended[t]: [TB, H] f32 (token t output of MHA + out-proj)
    for i in range(SEQ):
        m = jnp.maximum(jnp.maximum(s[i][0], s[i][1]), s[i][2])
        e0 = jnp.exp(s[i][0] - m)
        e1 = jnp.exp(s[i][1] - m)
        e2 = jnp.exp(s[i][2] - m)
        denom = e0 + e1 + e2
        o_i = (e0 * v[0] + e1 * v[1] + e2 * v[2]) / denom          # [TB, H]
        attended.append(jnp.dot(o_i.astype(cd), wo, preferred_element_type=f32) + bo)

    # ---- gate: flat @ wg == sum_t attended[t] @ wg[t]  (no lane-concat flatten) ----
    g = bg_ref[...]                                                # [1, 3H] f32
    for t in range(SEQ):
        g = g + jnp.dot(attended[t].astype(cd), wg_ref[t], preferred_element_type=f32)
    gates = jax.nn.sigmoid(g)                                      # [TB, 3H]

    # ---- output linear: (gates * flat) @ wout == sum_t (gates_t * attended[t]) @ wout[t] ----
    y = bout_ref[...]                                              # [1, 3H] f32
    for t in range(SEQ):
        gated_t = gates[:, t * H:(t + 1) * H] * attended[t]        # [TB, H]
        y = y + jnp.dot(gated_t.astype(cd), wout_ref[t], preferred_element_type=f32)

    # ---- LayerNorm (f32) + ReLU --------------------------------------------------
    mu = jnp.mean(y, axis=-1, keepdims=True)
    var = jnp.mean((y - mu) ** 2, axis=-1, keepdims=True)
    yn = (y - mu) * lax.rsqrt(var + LN_EPS)
    yn = yn * gamma_ref[...] + beta_ref[...]
    out_ref[...] = jnp.maximum(yn, 0.0).astype(out_ref.dtype)
    # TODO(synk): attention dropout / nn.Dropout are identity in eval mode; not implemented.
    # NOTE: for small H the [B, 3H] output is not lane-dense (3H < 128) -> masked stores;
    # at realistic H (>=128) stores are full-width.


def cross_modal_fusion(text, quad, attn, params, num_heads=NUM_HEADS,
                       compute_dtype=jnp.float32, block_batch=128):
    B, H = text.shape
    assert H % num_heads == 0, "hidden_size must be divisible by num_heads"
    H3 = 3 * H
    hd = H // num_heads
    cd = compute_dtype
    f32 = jnp.float32

    # ---- fold / fuse parameters outside the kernel (cheap one-time XLA ops) ------
    wqkv = jnp.concatenate([params["wq"], params["wk"], params["wv"]], axis=1).astype(cd)
    bqkv = jnp.concatenate([params["bq"], params["bk"], params["bv"]], axis=1).astype(f32)
    wo = params["wo"].astype(cd)
    bo = params["bo"].astype(f32)
    wg3 = params["wg"].reshape(SEQ, H, H3).astype(cd)      # row-block split of [3H, 3H]
    bg = params["bg"].astype(f32)
    wout3 = params["wout"].reshape(SEQ, H, H3).astype(cd)
    bout = params["bout"].astype(f32)
    gamma = params["gamma"].astype(f32)
    beta = params["beta"].astype(f32)

    head_id = jnp.arange(H, dtype=jnp.int32) // hd
    seg = (head_id[:, None] == head_id[None, :]).astype(f32) * (1.0 / math.sqrt(hd))

    # ---- batch tiling (weights stay resident; batch axis pipelined/parallel) -----
    tb = B if B <= block_batch else block_batch            # 128-row tiles for large B
    n_blk = pl.cdiv(B, tb)
    b_pad = n_blk * tb
    if b_pad != B:
        pad = ((0, b_pad - B), (0, 0))
        text, quad, attn = (jnp.pad(a, pad) for a in (text, quad, attn))
    text = text.astype(cd)
    quad = quad.astype(cd)
    attn = attn.astype(cd)

    args = (text, quad, attn, wqkv, bqkv, wo, bo, wg3, bg, wout3, bout, gamma, beta, seg)

    def _tile(shape):       # batch-tiled operand
        return pl.BlockSpec(shape, lambda i: (i,) + (0,) * (len(shape) - 1))

    def _resident(shape):   # whole array, same block on every grid step -> stays in VMEM
        n = len(shape)
        return pl.BlockSpec(shape, lambda i, n=n: (0,) * n)

    in_specs = [
        _tile((tb, H)), _tile((tb, H)), _tile((tb, H)),
        _resident(wqkv.shape), _resident(bqkv.shape),
        _resident(wo.shape), _resident(bo.shape),
        _resident(wg3.shape), _resident(bg.shape),
        _resident(wout3.shape), _resident(bout.shape),
        _resident(gamma.shape), _resident(beta.shape),
        _resident(seg.shape),
    ]
    out_spec = _tile((tb, H3))

    # rough VMEM budget: all blocks (double-buffered) + output tile + headroom
    block_bytes = sum(math.prod(a.shape) * a.dtype.itemsize for a in args) + tb * H3 * 4
    vmem_limit = int(min(64 * 2**20, max(16 * 2**20, 2 * block_bytes + 8 * 2**20)))

    kernel = functools.partial(fusion_kernel, hidden=H, compute_dtype=cd)
    out = pl.pallas_call(
        kernel,
        grid=(n_blk,),
        in_specs=in_specs,
        out_specs=out_spec,
        out_shape=jax.ShapeDtypeStruct((b_pad, H3), jnp.float32),
        compiler_params=pltpu.CompilerParams(
            dimension_semantics=("parallel",),
            vmem_limit_bytes=vmem_limit),
    )(*args)
    return out[:B] if b_pad != B else out


def reference(text, quad, attn, p, num_heads=NUM_HEADS, compute_dtype=jnp.float32):
    """Pure-JAX reference mirroring torch nn.MultiheadAttention + gate + output layer.
    compute_dtype controls the matmul-input precision (accumulation stays f32),
    mirroring the kernel's cast points."""
    cd = compute_dtype
    f32 = jnp.float32
    B, H = text.shape
    hd = H // num_heads
    x = jnp.stack([text, quad, attn], axis=1).astype(cd)            # [B, 3, H]

    def proj(a, w, b):
        r = jnp.dot(a.reshape(-1, H).astype(cd), w.astype(cd), preferred_element_type=f32)
        return r.reshape(B, SEQ, -1) + b

    q = proj(x, p["wq"], p["bq"])
    k = proj(x, p["wk"], p["bk"])
    v = proj(x, p["wv"], p["bv"])
    qh = q.reshape(B, SEQ, num_heads, hd).transpose(0, 2, 1, 3)
    kh = k.reshape(B, SEQ, num_heads, hd).transpose(0, 2, 1, 3)
    vh = v.reshape(B, SEQ, num_heads, hd).transpose(0, 2, 1, 3)
    s = jnp.einsum("bhqd,bhkd->bhqk", qh, kh) / math.sqrt(hd)
    a = jax.nn.softmax(s, axis=-1)
    o = jnp.einsum("bhqk,bhkd->bhqd", a, vh).transpose(0, 2, 1, 3).reshape(B, SEQ, H)
    attended = (jnp.dot(o.reshape(B * SEQ, H).astype(cd), p["wo"].astype(cd),
                        preferred_element_type=f32).reshape(B, SEQ, H) + p["bo"])
    flat = attended.reshape(B, SEQ * H)
    gates = jax.nn.sigmoid(jnp.dot(flat.astype(cd), p["wg"].astype(cd),
                                   preferred_element_type=f32) + p["bg"])
    gated = gates * flat
    y = jnp.dot(gated.astype(cd), p["wout"].astype(cd),
                preferred_element_type=f32) + p["bout"]
    mu = y.mean(-1, keepdims=True)
    var = ((y - mu) ** 2).mean(-1, keepdims=True)
    yn = (y - mu) / jnp.sqrt(var + LN_EPS) * p["gamma"] + p["beta"]
    return jax.nn.relu(yn)


def init_params(key, hidden):
    H3 = 3 * hidden
    ks = jax.random.split(key, 8)
    sc_h = 1.0 / math.sqrt(hidden)
    sc_h3 = 1.0 / math.sqrt(H3)

    def rnd(k, shape, scale):
        return jax.random.normal(k, shape, jnp.float32) * scale

    return {
        "wq": rnd(ks[0], (hidden, hidden), sc_h),
        "wk": rnd(ks[1], (hidden, hidden), sc_h),
        "wv": rnd(ks[2], (hidden, hidden), sc_h),
        "bq": jnp.zeros((1, hidden), jnp.float32),
        "bk": jnp.zeros((1, hidden), jnp.float32),
        "bv": jnp.zeros((1, hidden), jnp.float32),
        "wo": rnd(ks[3], (hidden, hidden), sc_h),
        "bo": rnd(ks[4], (1, hidden), 0.01),
        "wg": rnd(ks[5], (H3, H3), sc_h3),
        "bg": jnp.zeros((1, H3), jnp.float32),
        "wout": rnd(ks[6], (H3, H3), sc_h3),
        "bout": rnd(ks[7], (1, H3), 0.01),
        "gamma": jnp.ones((1, H3), jnp.float32),
        "beta": jnp.zeros((1, H3), jnp.float32),
    }


if __name__ == "__main__":
    B, H = 2, 32  # hidden_size must be divisible by num_heads=8
    root = jax.random.PRNGKey(0)
    k_t, k_q, k_a, k_p = jax.random.split(root, 4)
    text = jax.random.normal(k_t, (B, H), jnp.float32)
    quad = jax.random.normal(k_q, (B, H), jnp.float32)
    attn = jax.random.normal(k_a, (B, H), jnp.float32)
    params = init_params(k_p, H)

    # 1) exact-semantics check in f32
    out = jax.block_until_ready(
        cross_modal_fusion(text, quad, attn, params, compute_dtype=jnp.float32))
    ref = jax.block_until_ready(
        reference(text, quad, attn, params, compute_dtype=jnp.float32))
    assert out.shape == (B, 3 * H)
    assert jnp.allclose(out, ref, atol=1e-4, rtol=1e-4), (
        f"f32 max abs diff {float(jnp.max(jnp.abs(out - ref)))}")

    # 2) bf16 fast path (bf16 weights/activations on the MXU, f32 accumulation)
    out_bf = jax.block_until_ready(
        cross_modal_fusion(text, quad, attn, params, compute_dtype=jnp.bfloat16))
    ref_bf = jax.block_until_ready(
        reference(text, quad, attn, params, compute_dtype=jnp.bfloat16))
    assert jnp.allclose(out_bf, ref_bf, atol=5e-2, rtol=5e-2), (
        f"bf16 max abs diff {float(jnp.max(jnp.abs(out_bf - ref_bf)))}")

    # 3) tiled-grid path (B > tile): 2 batch tiles of 128, weights resident, bf16
    B2, H2 = 256, 64
    k_t2, k_q2, k_a2, k_p2 = jax.random.split(jax.random.PRNGKey(1), 4)
    text2 = jax.random.normal(k_t2, (B2, H2), jnp.float32)
    quad2 = jax.random.normal(k_q2, (B2, H2), jnp.float32)
    attn2 = jax.random.normal(k_a2, (B2, H2), jnp.float32)
    params2 = init_params(k_p2, H2)
    out2 = jax.block_until_ready(
        cross_modal_fusion(text2, quad2, attn2, params2, compute_dtype=jnp.bfloat16))
    ref2 = jax.block_until_ready(
        reference(text2, quad2, attn2, params2, compute_dtype=jnp.bfloat16))
    assert out2.shape == (B2, 3 * H2)
    assert jnp.allclose(out2, ref2, atol=5e-2, rtol=5e-2), (
        f"tiled bf16 max abs diff {float(jnp.max(jnp.abs(out2 - ref2)))}")

    print("KERNEL_OK")
</pallas_src>

<mosaic_0001>
module attributes {stable_mosaic.version = 11 : i64} {
  func.func @fusion_kernel(%arg0: i32, %arg1: memref<2x32xf32, #tpu.memory_space<vmem>>, %arg2: memref<2x32xf32, #tpu.memory_space<vmem>>, %arg3: memref<2x32xf32, #tpu.memory_space<vmem>>, %arg4: memref<32x96xf32, #tpu.memory_space<vmem>>, %arg5: memref<1x96xf32, #tpu.memory_space<vmem>>, %arg6: memref<32x32xf32, #tpu.memory_space<vmem>>, %arg7: memref<1x32xf32, #tpu.memory_space<vmem>>, %arg8: memref<3x32x96xf32, #tpu.memory_space<vmem>>, %arg9: memref<1x96xf32, #tpu.memory_space<vmem>>, %arg10: memref<3x32x96xf32, #tpu.memory_space<vmem>>, %arg11: memref<1x96xf32, #tpu.memory_space<vmem>>, %arg12: memref<1x96xf32, #tpu.memory_space<vmem>>, %arg13: memref<1x96xf32, #tpu.memory_space<vmem>>, %arg14: memref<32x32xf32, #tpu.memory_space<vmem>>, %arg15: memref<2x96xf32, #tpu.memory_space<vmem>>) attributes {dimension_semantics = [#tpu.dimension_semantics<parallel>], iteration_bounds = array<i64: 1>, scalar_prefetch = 0 : i64, scratch_operands = 0 : i64, tpu.core_type = #tpu.core_type<tc>, window_params = [{transform_indices = @transform_0, window_bounds = array<i64: 2, 32>}, {transform_indices = @transform_1, window_bounds = array<i64: 2, 32>}, {transform_indices = @transform_2, window_bounds = array<i64: 2, 32>}, {pipeline_mode = #tpu.pipeline_mode<synchronous>, transform_indices = @transform_3, window_bounds = array<i64: 32, 96>}, {pipeline_mode = #tpu.pipeline_mode<synchronous>, transform_indices = @transform_4, window_bounds = array<i64: 1, 96>}, {pipeline_mode = #tpu.pipeline_mode<synchronous>, transform_indices = @transform_5, window_bounds = array<i64: 32, 32>}, {pipeline_mode = #tpu.pipeline_mode<synchronous>, transform_indices = @transform_6, window_bounds = array<i64: 1, 32>}, {pipeline_mode = #tpu.pipeline_mode<synchronous>, transform_indices = @transform_7, window_bounds = array<i64: 3, 32, 96>}, {pipeline_mode = #tpu.pipeline_mode<synchronous>, transform_indices = @transform_8, window_bounds = array<i64: 1, 96>}, {pipeline_mode = #tpu.pipeline_mode<synchronous>, transform_indices = @transform_9, window_bounds = array<i64: 3, 32, 96>}, {pipeline_mode = #tpu.pipeline_mode<synchronous>, transform_indices = @transform_10, window_bounds = array<i64: 1, 96>}, {pipeline_mode = #tpu.pipeline_mode<synchronous>, transform_indices = @transform_11, window_bounds = array<i64: 1, 96>}, {pipeline_mode = #tpu.pipeline_mode<synchronous>, transform_indices = @transform_12, window_bounds = array<i64: 1, 96>}, {pipeline_mode = #tpu.pipeline_mode<synchronous>, transform_indices = @transform_13, window_bounds = array<i64: 32, 32>}, {transform_indices = @transform_14, window_bounds = array<i64: 2, 96>}]} {
    %c0 = arith.constant 0 : index
    %c0_0 = arith.constant 0 : index
    %0 = vector.load %arg4[%c0, %c0_0] : memref<32x96xf32, #tpu.memory_space<vmem>>, vector<32x96xf32>
    %c0_1 = arith.constant 0 : index
    %c0_2 = arith.constant 0 : index
    %1 = vector.load %arg5[%c0_1, %c0_2] : memref<1x96xf32, #tpu.memory_space<vmem>>, vector<1x96xf32>
    %c0_3 = arith.constant 0 : index
    %c0_4 = arith.constant 0 : index
    %2 = vector.load %arg14[%c0_3, %c0_4] : memref<32x32xf32, #tpu.memory_space<vmem>>, vector<32x32xf32>
    %c0_5 = arith.constant 0 : index
    %c0_6 = arith.constant 0 : index
    %3 = vector.load %arg1[%c0_5, %c0_6] : memref<2x32xf32, #tpu.memory_space<vmem>>, vector<2x32xf32>
    %cst = arith.constant dense<0.000000e+00> : vector<2x96xf32>
    %4 = tpu.matmul %3, %0, %cst {dimension_numbers = #tpu.dot_dimension_numbers<[1], [0], [0], [1], [0, 0, 1, 1], [], []>} : vector<2x32xf32>, vector<32x96xf32>, vector<2x96xf32> -> vector<2x96xf32>
    %5 = vector.broadcast %1 : vector<1x96xf32> to vector<2x96xf32>
    %6 = arith.addf %4, %5 : vector<2x96xf32>
    %7 = vector.extract_strided_slice %6 {offsets = [0, 0], sizes = [2, 32], strides = [1, 1]} : vector<2x96xf32> to vector<2x32xf32>
    %8 = vector.extract_strided_slice %6 {offsets = [0, 32], sizes = [2, 32], strides = [1, 1]} : vector<2x96xf32> to vector<2x32xf32>
    %9 = vector.extract_strided_slice %6 {offsets = [0, 64], sizes = [2, 32], strides = [1, 1]} : vector<2x96xf32> to vector<2x32xf32>
    %c0_7 = arith.constant 0 : index
    %c0_8 = arith.constant 0 : index
    %10 = vector.load %arg2[%c0_7, %c0_8] : memref<2x32xf32, #tpu.memory_space<vmem>>, vector<2x32xf32>
    %cst_9 = arith.constant dense<0.000000e+00> : vector<2x96xf32>
    %11 = tpu.matmul %10, %0, %cst_9 {dimension_numbers = #tpu.dot_dimension_numbers<[1], [0], [0], [1], [0, 0, 1, 1], [], []>} : vector<2x32xf32>, vector<32x96xf32>, vector<2x96xf32> -> vector<2x96xf32>
    %12 = vector.broadcast %1 : vector<1x96xf32> to vector<2x96xf32>
    %13 = arith.addf %11, %12 : vector<2x96xf32>
    %14 = vector.extract_strided_slice %13 {offsets = [0, 0], sizes = [2, 32], strides = [1, 1]} : vector<2x96xf32> to vector<2x32xf32>
    %15 = vector.extract_strided_slice %13 {offsets = [0, 32], sizes = [2, 32], strides = [1, 1]} : vector<2x96xf32> to vector<2x32xf32>
    %16 = vector.extract_strided_slice %13 {offsets = [0, 64], sizes = [2, 32], strides = [1, 1]} : vector<2x96xf32> to vector<2x32xf32>
    %c0_10 = arith.constant 0 : index
    %c0_11 = arith.constant 0 : index
    %17 = vector.load %arg3[%c0_10, %c0_11] : memref<2x32xf32, #tpu.memory_space<vmem>>, vector<2x32xf32>
    %cst_12 = arith.constant dense<0.000000e+00> : vector<2x96xf32>
    %18 = tpu.matmul %17, %0, %cst_12 {dimension_numbers = #tpu.dot_dimension_numbers<[1], [0], [0], [1], [0, 0, 1, 1], [], []>} : vector<2x32xf32>, vector<32x96xf32>, vector<2x96xf32> -> vector<2x96xf32>
    %19 = vector.broadcast %1 : vector<1x96xf32> to vector<2x96xf32>
    %20 = arith.addf %18, %19 : vector<2x96xf32>
    %21 = vector.extract_strided_slice %20 {offsets = [0, 0], sizes = [2, 32], strides = [1, 1]} : vector<2x96xf32> to vector<2x32xf32>
    %22 = vector.extract_strided_slice %20 {offsets = [0, 32], sizes = [2, 32], strides = [1, 1]} : vector<2x96xf32> to vector<2x32xf32>
    %23 = vector.extract_strided_slice %20 {offsets = [0, 64], sizes = [2, 32], strides = [1, 1]} : vector<2x96xf32> to vector<2x32xf32>
    %24 = arith.mulf %7, %8 : vector<2x32xf32>
    %cst_13 = arith.constant dense<0.000000e+00> : vector<2x32xf32>
    %25 = tpu.matmul %24, %2, %cst_13 {dimension_numbers = #tpu.dot_dimension_numbers<[1], [0], [0], [1], [0, 0, 1, 1], [], []>} : vector<2x32xf32>, vector<32x32xf32>, vector<2x32xf32> -> vector<2x32xf32>
    %26 = arith.mulf %7, %15 : vector<2x32xf32>
    %cst_14 = arith.constant dense<0.000000e+00> : vector<2x32xf32>
    %27 = tpu.matmul %26, %2, %cst_14 {dimension_numbers = #tpu.dot_dimension_numbers<[1], [0], [0], [1], [0, 0, 1, 1], [], []>} : vector<2x32xf32>, vector<32x32xf32>, vector<2x32xf32> -> vector<2x32xf32>
    %28 = arith.mulf %7, %22 : vector<2x32xf32>
    %cst_15 = arith.constant dense<0.000000e+00> : vector<2x32xf32>
    %29 = tpu.matmul %28, %2, %cst_15 {dimension_numbers = #tpu.dot_dimension_numbers<[1], [0], [0], [1], [0, 0, 1, 1], [], []>} : vector<2x32xf32>, vector<32x32xf32>, vector<2x32xf32> -> vector<2x32xf32>
    %30 = arith.mulf %14, %8 : vector<2x32xf32>
    %cst_16 = arith.constant dense<0.000000e+00> : vector<2x32xf32>
    %31 = tpu.matmul %30, %2, %cst_16 {dimension_numbers = #tpu.dot_dimension_numbers<[1], [0], [0], [1], [0, 0, 1, 1], [], []>} : vector<2x32xf32>, vector<32x32xf32>, vector<2x32xf32> -> vector<2x32xf32>
    %32 = arith.mulf %14, %15 : vector<2x32xf32>
    %cst_17 = arith.constant dense<0.000000e+00> : vector<2x32xf32>
    %33 = tpu.matmul %32, %2, %cst_17 {dimension_numbers = #tpu.dot_dimension_numbers<[1], [0], [0], [1], [0, 0, 1, 1], [], []>} : vector<2x32xf32>, vector<32x32xf32>, vector<2x32xf32> -> vector<2x32xf32>
    %34 = arith.mulf %14, %22 : vector<2x32xf32>
    %cst_18 = arith.constant dense<0.000000e+00> : vector<2x32xf32>
    %35 = tpu.matmul %34, %2, %cst_18 {dimension_numbers = #tpu.dot_dimension_numbers<[1], [0], [0], [1], [0, 0, 1, 1], [], []>} : vector<2x32xf32>, vector<32x32xf32>, vector<2x32xf32> -> vector<2x32xf32>
    %36 = arith.mulf %21, %8 : vector<2x32xf32>
    %cst_19 = arith.constant dense<0.000000e+00> : vector<2x32xf32>
    %37 = tpu.matmul %36, %2, %cst_19 {dimension_numbers = #tpu.dot_dimension_numbers<[1], [0], [0], [1], [0, 0, 1, 1], [], []>} : vector<2x32xf32>, vector<32x32xf32>, vector<2x32xf32> -> vector<2x32xf32>
    %38 = arith.mulf %21, %15 : vector<2x32xf32>
    %cst_20 = arith.constant dense<0.000000e+00> : vector<2x32xf32>
    %39 = tpu.matmul %38, %2, %cst_20 {dimension_numbers = #tpu.dot_dimension_numbers<[1], [0], [0], [1], [0, 0, 1, 1], [], []>} : vector<2x32xf32>, vector<32x32xf32>, vector<2x32xf32> -> vector<2x32xf32>
    %40 = arith.mulf %21, %22 : vector<2x32xf32>
    %cst_21 = arith.constant dense<0.000000e+00> : vector<2x32xf32>
    %41 = tpu.matmul %40, %2, %cst_21 {dimension_numbers = #tpu.dot_dimension_numbers<[1], [0], [0], [1], [0, 0, 1, 1], [], []>} : vector<2x32xf32>, vector<32x32xf32>, vector<2x32xf32> -> vector<2x32xf32>
    %c0_22 = arith.constant 0 : index
    %c0_23 = arith.constant 0 : index
    %42 = vector.load %arg6[%c0_22, %c0_23] : memref<32x32xf32, #tpu.memory_space<vmem>>, vector<32x32xf32>
    %c0_24 = arith.constant 0 : index
    %c0_25 = arith.constant 0 : index
    %43 = vector.load %arg7[%c0_24, %c0_25] : memref<1x32xf32, #tpu.memory_space<vmem>>, vector<1x32xf32>
    %44 = arith.maximumf %25, %27 : vector<2x32xf32>
    %45 = arith.maximumf %44, %29 : vector<2x32xf32>
    %46 = arith.subf %25, %45 : vector<2x32xf32>
    %47 = math.exp %46 : vector<2x32xf32>
    %48 = arith.subf %27, %45 : vector<2x32xf32>
    %49 = math.exp %48 : vector<2x32xf32>
    %50 = arith.subf %29, %45 : vector<2x32xf32>
    %51 = math.exp %50 : vector<2x32xf32>
    %52 = arith.addf %47, %49 : vector<2x32xf32>
    %53 = arith.addf %52, %51 : vector<2x32xf32>
    %54 = arith.mulf %47, %9 : vector<2x32xf32>
    %55 = arith.mulf %49, %16 : vector<2x32xf32>
    %56 = arith.addf %54, %55 : vector<2x32xf32>
    %57 = arith.mulf %51, %23 : vector<2x32xf32>
    %58 = arith.addf %56, %57 : vector<2x32xf32>
    %59 = arith.divf %58, %53 : vector<2x32xf32>
    %cst_26 = arith.constant dense<0.000000e+00> : vector<2x32xf32>
    %60 = tpu.matmul %59, %42, %cst_26 {dimension_numbers = #tpu.dot_dimension_numbers<[1], [0], [0], [1], [0, 0, 1, 1], [], []>} : vector<2x32xf32>, vector<32x32xf32>, vector<2x32xf32> -> vector<2x32xf32>
    %61 = vector.broadcast %43 : vector<1x32xf32> to vector<2x32xf32>
    %62 = arith.addf %60, %61 : vector<2x32xf32>
    %63 = arith.maximumf %31, %33 : vector<2x32xf32>
    %64 = arith.maximumf %63, %35 : vector<2x32xf32>
    %65 = arith.subf %31, %64 : vector<2x32xf32>
    %66 = math.exp %65 : vector<2x32xf32>
    %67 = arith.subf %33, %64 : vector<2x32xf32>
    %68 = math.exp %67 : vector<2x32xf32>
    %69 = arith.subf %35, %64 : vector<2x32xf32>
    %70 = math.exp %69 : vector<2x32xf32>
    %71 = arith.addf %66, %68 : vector<2x32xf32>
    %72 = arith.addf %71, %70 : vector<2x32xf32>
    %73 = arith.mulf %66, %9 : vector<2x32xf32>
    %74 = arith.mulf %68, %16 : vector<2x32xf32>
    %75 = arith.addf %73, %74 : vector<2x32xf32>
    %76 = arith.mulf %70, %23 : vector<2x32xf32>
    %77 = arith.addf %75, %76 : vector<2x32xf32>
    %78 = arith.divf %77, %72 : vector<2x32xf32>
    %cst_27 = arith.constant dense<0.000000e+00> : vector<2x32xf32>
    %79 = tpu.matmul %78, %42, %cst_27 {dimension_numbers = #tpu.dot_dimension_numbers<[1], [0], [0], [1], [0, 0, 1, 1], [], []>} : vector<2x32xf32>, vector<32x32xf32>, vector<2x32xf32> -> vector<2x32xf32>
    %80 = vector.broadcast %43 : vector<1x32xf32> to vector<2x32xf32>
    %81 = arith.addf %79, %80 : vector<2x32xf32>
    %82 = arith.maximumf %37, %39 : vector<2x32xf32>
    %83 = arith.maximumf %82, %41 : vector<2x32xf32>
    %84 = arith.subf %37, %83 : vector<2x32xf32>
    %85 = math.exp %84 : vector<2x32xf32>
    %86 = arith.subf %39, %83 : vector<2x32xf32>
    %87 = math.exp %86 : vector<2x32xf32>
    %88 = arith.subf %41, %83 : vector<2x32xf32>
    %89 = math.exp %88 : vector<2x32xf32>
    %90 = arith.addf %85, %87 : vector<2x32xf32>
    %91 = arith.addf %90, %89 : vector<2x32xf32>
    %92 = arith.mulf %85, %9 : vector<2x32xf32>
    %93 = arith.mulf %87, %16 : vector<2x32xf32>
    %94 = arith.addf %92, %93 : vector<2x32xf32>
    %95 = arith.mulf %89, %23 : vector<2x32xf32>
    %96 = arith.addf %94, %95 : vector<2x32xf32>
    %97 = arith.divf %96, %91 : vector<2x32xf32>
    %cst_28 = arith.constant dense<0.000000e+00> : vector<2x32xf32>
    %98 = tpu.matmul %97, %42, %cst_28 {dimension_numbers = #tpu.dot_dimension_numbers<[1], [0], [0], [1], [0, 0, 1, 1], [], []>} : vector<2x32xf32>, vector<32x32xf32>, vector<2x32xf32> -> vector<2x32xf32>
    %99 = vector.broadcast %43 : vector<1x32xf32> to vector<2x32xf32>
    %100 = arith.addf %98, %99 : vector<2x32xf32>
    %c0_29 = arith.constant 0 : index
    %c0_30 = arith.constant 0 : index
    %101 = vector.load %arg9[%c0_29, %c0_30] : memref<1x96xf32, #tpu.memory_space<vmem>>, vector<1x96xf32>
    %c0_31 = arith.constant 0 : index
    %c0_32 = arith.constant 0 : index
    %c0_33 = arith.constant 0 : index
    %102 = vector.load %arg8[%c0_31, %c0_32, %c0_33] : memref<3x32x96xf32, #tpu.memory_space<vmem>>, vector<1x32x96xf32>
    %103 = vector.shape_cast %102 : vector<1x32x96xf32> to vector<32x96xf32>
    %cst_34 = arith.constant dense<0.000000e+00> : vector<2x96xf32>
    %104 = tpu.matmul %62, %103, %cst_34 {dimension_numbers = #tpu.dot_dimension_numbers<[1], [0], [0], [1], [0, 0, 1, 1], [], []>} : vector<2x32xf32>, vector<32x96xf32>, vector<2x96xf32> -> vector<2x96xf32>
    %105 = vector.broadcast %101 : vector<1x96xf32> to vector<2x96xf32>
    %106 = arith.addf %105, %104 : vector<2x96xf32>
    %c1 = arith.constant 1 : index
    %c0_35 = arith.constant 0 : index
    %c0_36 = arith.constant 0 : index
    %107 = vector.load %arg8[%c1, %c0_35, %c0_36] : memref<3x32x96xf32, #tpu.memory_space<vmem>>, vector<1x32x96xf32>
    %108 = vector.shape_cast %107 : vector<1x32x96xf32> to vector<32x96xf32>
    %cst_37 = arith.constant dense<0.000000e+00> : vector<2x96xf32>
    %109 = tpu.matmul %81, %108, %cst_37 {dimension_numbers = #tpu.dot_dimension_numbers<[1], [0], [0], [1], [0, 0, 1, 1], [], []>} : vector<2x32xf32>, vector<32x96xf32>, vector<2x96xf32> -> vector<2x96xf32>
    %110 = arith.addf %106, %109 : vector<2x96xf32>
    %c2 = arith.constant 2 : index
    %c0_38 = arith.constant 0 : index
    %c0_39 = arith.constant 0 : index
    %111 = vector.load %arg8[%c2, %c0_38, %c0_39] : memref<3x32x96xf32, #tpu.memory_space<vmem>>, vector<1x32x96xf32>
    %112 = vector.shape_cast %111 : vector<1x32x96xf32> to vector<32x96xf32>
    %cst_40 = arith.constant dense<0.000000e+00> : vector<2x96xf32>
    %113 = tpu.matmul %100, %112, %cst_40 {dimension_numbers = #tpu.dot_dimension_numbers<[1], [0], [0], [1], [0, 0, 1, 1], [], []>} : vector<2x32xf32>, vector<32x96xf32>, vector<2x96xf32> -> vector<2x96xf32>
    %114 = arith.addf %110, %113 : vector<2x96xf32>
    %115 = arith.negf %114 : vector<2x96xf32>
    %116 = math.exp %115 : vector<2x96xf32>
    %cst_41 = arith.constant 1.000000e+00 : f32
    %117 = vector.broadcast %cst_41 : f32 to vector<2x96xf32>
    %118 = arith.addf %117, %116 : vector<2x96xf32>
    %119 = arith.divf %117, %118 : vector<2x96xf32>
    %c0_42 = arith.constant 0 : index
    %c0_43 = arith.constant 0 : index
    %120 = vector.load %arg11[%c0_42, %c0_43] : memref<1x96xf32, #tpu.memory_space<vmem>>, vector<1x96xf32>
    %121 = vector.extract_strided_slice %119 {offsets = [0, 0], sizes = [2, 32], strides = [1, 1]} : vector<2x96xf32> to vector<2x32xf32>
    %122 = arith.mulf %121, %62 : vector<2x32xf32>
    %c0_44 = arith.constant 0 : index
    %c0_45 = arith.constant 0 : index
    %c0_46 = arith.constant 0 : index
    %123 = vector.load %arg10[%c0_44, %c0_45, %c0_46] : memref<3x32x96xf32, #tpu.memory_space<vmem>>, vector<1x32x96xf32>
    %124 = vector.shape_cast %123 : vector<1x32x96xf32> to vector<32x96xf32>
    %cst_47 = arith.constant dense<0.000000e+00> : vector<2x96xf32>
    %125 = tpu.matmul %122, %124, %cst_47 {dimension_numbers = #tpu.dot_dimension_numbers<[1], [0], [0], [1], [0, 0, 1, 1], [], []>} : vector<2x32xf32>, vector<32x96xf32>, vector<2x96xf32> -> vector<2x96xf32>
    %126 = vector.broadcast %120 : vector<1x96xf32> to vector<2x96xf32>
    %127 = arith.addf %126, %125 : vector<2x96xf32>
    %128 = vector.extract_strided_slice %119 {offsets = [0, 32], sizes = [2, 32], strides = [1, 1]} : vector<2x96xf32> to vector<2x32xf32>
    %129 = arith.mulf %128, %81 : vector<2x32xf32>
    %c1_48 = arith.constant 1 : index
    %c0_49 = arith.constant 0 : index
    %c0_50 = arith.constant 0 : index
    %130 = vector.load %arg10[%c1_48, %c0_49, %c0_50] : memref<3x32x96xf32, #tpu.memory_space<vmem>>, vector<1x32x96xf32>
    %131 = vector.shape_cast %130 : vector<1x32x96xf32> to vector<32x96xf32>
    %cst_51 = arith.constant dense<0.000000e+00> : vector<2x96xf32>
    %132 = tpu.matmul %129, %131, %cst_51 {dimension_numbers = #tpu.dot_dimension_numbers<[1], [0], [0], [1], [0, 0, 1, 1], [], []>} : vector<2x32xf32>, vector<32x96xf32>, vector<2x96xf32> -> vector<2x96xf32>
    %133 = arith.addf %127, %132 : vector<2x96xf32>
    %134 = vector.extract_strided_slice %119 {offsets = [0, 64], sizes = [2, 32], strides = [1, 1]} : vector<2x96xf32> to vector<2x32xf32>
    %135 = arith.mulf %134, %100 : vector<2x32xf32>
    %c2_52 = arith.constant 2 : index
    %c0_53 = arith.constant 0 : index
    %c0_54 = arith.constant 0 : index
    %136 = vector.load %arg10[%c2_52, %c0_53, %c0_54] : memref<3x32x96xf32, #tpu.memory_space<vmem>>, vector<1x32x96xf32>
    %137 = vector.shape_cast %136 : vector<1x32x96xf32> to vector<32x96xf32>
    %cst_55 = arith.constant dense<0.000000e+00> : vector<2x96xf32>
    %138 = tpu.matmul %135, %137, %cst_55 {dimension_numbers = #tpu.dot_dimension_numbers<[1], [0], [0], [1], [0, 0, 1, 1], [], []>} : vector<2x32xf32>, vector<32x96xf32>, vector<2x96xf32> -> vector<2x96xf32>
    %139 = arith.addf %133, %138 : vector<2x96xf32>
    %cst_56 = arith.constant dense<0.000000e+00> : vector<2xf32>
    %140 = vector.multi_reduction <add>, %139, %cst_56 [1] : vector<2x96xf32> to vector<2xf32>
    %141 = vector.shape_cast %140 : vector<2xf32> to vector<2x1xf32>
    %cst_57 = arith.constant 9.600000e+01 : f32
    %142 = vector.broadcast %cst_57 : f32 to vector<2x1xf32>
    %143 = arith.divf %141, %142 : vector<2x1xf32>
    %144 = vector.broadcast %143 : vector<2x1xf32> to vector<2x96xf32>
    %145 = arith.subf %139, %144 : vector<2x96xf32>
    %146 = arith.mulf %145, %145 : vector<2x96xf32>
    %cst_58 = arith.constant dense<0.000000e+00> : vector<2xf32>
    %147 = vector.multi_reduction <add>, %146, %cst_58 [1] : vector<2x96xf32> to vector<2xf32>
    %148 = vector.shape_cast %147 : vector<2xf32> to vector<2x1xf32>
    %cst_59 = arith.constant 9.600000e+01 : f32
    %149 = vector.broadcast %cst_59 : f32 to vector<2x1xf32>
    %150 = arith.divf %148, %149 : vector<2x1xf32>
    %151 = vector.broadcast %143 : vector<2x1xf32> to vector<2x96xf32>
    %152 = arith.subf %139, %151 : vector<2x96xf32>
    %cst_60 = arith.constant 9.99999974E-6 : f32
    %153 = vector.broadcast %cst_60 : f32 to vector<2x1xf32>
    %154 = arith.addf %150, %153 : vector<2x1xf32>
    %155 = math.rsqrt %154 : vector<2x1xf32>
    %156 = vector.broadcast %155 : vector<2x1xf32> to vector<2x96xf32>
    %157 = arith.mulf %152, %156 : vector<2x96xf32>
    %c0_61 = arith.constant 0 : index
    %c0_62 = arith.constant 0 : index
    %158 = vector.load %arg12[%c0_61, %c0_62] : memref<1x96xf32, #tpu.memory_space<vmem>>, vector<1x96xf32>
    %159 = vector.broadcast %158 : vector<1x96xf32> to vector<2x96xf32>
    %160 = arith.mulf %157, %159 : vector<2x96xf32>
    %c0_63 = arith.constant 0 : index
    %c0_64 = arith.constant 0 : index
    %161 = vector.load %arg13[%c0_63, %c0_64] : memref<1x96xf32, #tpu.memory_space<vmem>>, vector<1x96xf32>
    %162 = vector.broadcast %161 : vector<1x96xf32> to vector<2x96xf32>
    %163 = arith.addf %160, %162 : vector<2x96xf32>
    %cst_65 = arith.constant 0.000000e+00 : f32
    %164 = vector.broadcast %cst_65 : f32 to vector<2x96xf32>
    %165 = arith.maximumf %163, %164 : vector<2x96xf32>
    %c0_66 = arith.constant 0 : index
    %c0_67 = arith.constant 0 : index
    %166 = vector.load %arg15[%c0_66, %c0_67] : memref<2x96xf32, #tpu.memory_space<vmem>>, vector<2x96xf32>
    tpu.vector_store %arg15[%c0_66, %c0_67], %165 {strides = array<i32>} : memref<2x96xf32, #tpu.memory_space<vmem>>, vector<2x96xf32>,
    return
  }
  func.func @transform_0(%arg0: i32) -> (i32, i32) {
    %c0_i32 = arith.constant 0 : i32
    %c0_i32_0 = arith.constant 0 : i32
    return %arg0, %c0_i32 : i32, i32
  }
  func.func @transform_1(%arg0: i32) -> (i32, i32) {
    %c0_i32 = arith.constant 0 : i32
    %c0_i32_0 = arith.constant 0 : i32
    return %arg0, %c0_i32 : i32, i32
  }
  func.func @transform_2(%arg0: i32) -> (i32, i32) {
    %c0_i32 = arith.constant 0 : i32
    %c0_i32_0 = arith.constant 0 : i32
    return %arg0, %c0_i32 : i32, i32
  }
  func.func @transform_3(%arg0: i32) -> (i32, i32) {
    %c0_i32 = arith.constant 0 : i32
    %c0_i32_0 = arith.constant 0 : i32
    %c0_i32_1 = arith.constant 0 : i32
    return %c0_i32, %c0_i32_0 : i32, i32
  }
  func.func @transform_4(%arg0: i32) -> (i32, i32) {
    %c0_i32 = arith.constant 0 : i32
    %c0_i32_0 = arith.constant 0 : i32
    %c0_i32_1 = arith.constant 0 : i32
    return %c0_i32, %c0_i32_0 : i32, i32
  }
  func.func @transform_5(%arg0: i32) -> (i32, i32) {
    %c0_i32 = arith.constant 0 : i32
    %c0_i32_0 = arith.constant 0 : i32
    %c0_i32_1 = arith.constant 0 : i32
    return %c0_i32, %c0_i32_0 : i32, i32
  }
  func.func @transform_6(%arg0: i32) -> (i32, i32) {
    %c0_i32 = arith.constant 0 : i32
    %c0_i32_0 = arith.constant 0 : i32
    %c0_i32_1 = arith.constant 0 : i32
    return %c0_i32, %c0_i32_0 : i32, i32
  }
  func.func @transform_7(%arg0: i32) -> (i32, i32, i32) {
    %c0_i32 = arith.constant 0 : i32
    %c0_i32_0 = arith.constant 0 : i32
    %c0_i32_1 = arith.constant 0 : i32
    %c0_i32_2 = arith.constant 0 : i32
    return %c0_i32, %c0_i32_0, %c0_i32_1 : i32, i32, i32
  }
  func.func @transform_8(%arg0: i32) -> (i32, i32) {
    %c0_i32 = arith.constant 0 : i32
    %c0_i32_0 = arith.constant 0 : i32
    %c0_i32_1 = arith.constant 0 : i32
    return %c0_i32, %c0_i32_0 : i32, i32
  }
  func.func @transform_9(%arg0: i32) -> (i32, i32, i32) {
    %c0_i32 = arith.constant 0 : i32
    %c0_i32_0 = arith.constant 0 : i32
    %c0_i32_1 = arith.constant 0 : i32
    %c0_i32_2 = arith.constant 0 : i32
    return %c0_i32, %c0_i32_0, %c0_i32_1 : i32, i32, i32
  }
  func.func @transform_10(%arg0: i32) -> (i32, i32) {
    %c0_i32 = arith.constant 0 : i32
    %c0_i32_0 = arith.constant 0 : i32
    %c0_i32_1 = arith.constant 0 : i32
    return %c0_i32, %c0_i32_0 : i32, i32
  }
  func.func @transform_11(%arg0: i32) -> (i32, i32) {
    %c0_i32 = arith.constant 0 : i32
    %c0_i32_0 = arith.constant 0 : i32
    %c0_i32_1 = arith.constant 0 : i32
    return %c0_i32, %c0_i32_0 : i32, i32
  }
  func.func @transform_12(%arg0: i32) -> (i32, i32) {
    %c0_i32 = arith.constant 0 : i32
    %c0_i32_0 = arith.constant 0 : i32
    %c0_i32_1 = arith.constant 0 : i32
    return %c0_i32, %c0_i32_0 : i32, i32
  }
  func.func @transform_13(%arg0: i32) -> (i32, i32) {
    %c0_i32 = arith.constant 0 : i32
    %c0_i32_0 = arith.constant 0 : i32
    %c0_i32_1 = arith.constant 0 : i32
    return %c0_i32, %c0_i32_0 : i32, i32
  }
  func.func @transform_14(%arg0: i32) -> (i32, i32) {
    %c0_i32 = arith.constant 0 : i32
    %c0_i32_0 = arith.constant 0 : i32
    return %arg0, %c0_i32 : i32, i32
  }
}

</mosaic_0001>

<llo_original>
// kernel: tpu_custom_call.1
$region0: #{tpu_custom_call.1}
  #allocation0 [shape = 'u32[]', space=smem, size = 0x4, offset = 0x4, fixed_abs, tag = 'smem constant byte address 0x4 - core index']
  #allocation1 [shape = 'u32[72,128]{1,0:T(1,128)}', space=vmem, size = 0x9000, scoped, tag = 'internal scratch']
  %s0 = inlined_call_operand.hbm [shape: f32[2,32], index: 0, kind: input, shape index: {}]
  %s1 = inlined_call_operand.hbm [shape: f32[2,32], index: 1, kind: input, shape index: {}]
  %s2 = inlined_call_operand.hbm [shape: f32[2,32], index: 2, kind: input, shape index: {}]
  %s3 = inlined_call_operand.hbm [shape: f32[32,96], index: 3, kind: input, shape index: {}]
  %s4 = inlined_call_operand.vmem [shape: f32[1,96], index: 4, kind: input, shape index: {}]
  %s5 = inlined_call_operand.hbm [shape: f32[32,32], index: 5, kind: input, shape index: {}]
  %s6 = inlined_call_operand.vmem [shape: f32[1,32], index: 6, kind: input, shape index: {}]
  %s7 = inlined_call_operand.hbm [shape: f32[3,32,96], index: 7, kind: input, shape index: {}]
  %s8 = inlined_call_operand.vmem [shape: f32[1,96], index: 8, kind: input, shape index: {}]
  %s9 = inlined_call_operand.hbm [shape: f32[3,32,96], index: 9, kind: input, shape index: {}]
  %s10 = inlined_call_operand.vmem [shape: f32[1,96], index: 10, kind: input, shape index: {}]
  %s11 = inlined_call_operand.vmem [shape: f32[1,96], index: 11, kind: input, shape index: {}]
  %s12 = inlined_call_operand.vmem [shape: f32[1,96], index: 12, kind: input, shape index: {}]
  %s13 = inlined_call_operand.hbm [shape: f32[32,32], index: 13, kind: input, shape index: {}]
  %s14 = inlined_call_operand.hbm [shape: f32[2,96], index: 14, kind: output, shape index: {}]
  %s15 = sld [smem:[#allocation0]]
  $region98: #{tpu_custom_call.1} parent=0
    _
  %s17 = ssub.s32 1, %s15
  %s18 = scalar_select 0, %s17, %s15
  $region1: #{tpu_custom_call.1} parent=0
    #allocation2 [shape = 'u8[1024]{0}', space=vmem, size = 0x400, scoped, tag = 'input window, operand 0, single buffered']
    #allocation3 [shape = 's32[1]{0}', space=sflag, size = 0x4, scoped, tag = 'scoped memory for tpu_custom_call.1']
    #allocation4 [shape = 's32[1]{0}', space=sflag, size = 0x4, scoped, tag = 'scoped memory for tpu_custom_call.1']
    #allocation5 [shape = 'u8[1024]{0}', space=vmem, size = 0x400, scoped, tag = 'input window, operand 1, single buffered']
    #allocation6 [shape = 's32[1]{0}', space=sflag, size = 0x4, scoped, tag = 'scoped memory for tpu_custom_call.1']
    #allocation7 [shape = 'u8[1024]{0}', space=vmem, size = 0x400, scoped, tag = 'input window, operand 2, single buffered']
    #allocation8 [shape = 'u8[16384]{0}', space=vmem, size = 0x4000, scoped, tag = 'input window, operand 3, single buffered']
    #allocation9 [shape = 's32[1]{0}', space=sflag, size = 0x4, scoped, tag = 'scoped memory for tpu_custom_call.1']
    #allocation10 [shape = 'u8[16384]{0}', space=vmem, size = 0x4000, scoped, tag = 'input window, operand 5, single buffered']
    #allocation11 [shape = 'u8[49152]{0}', space=vmem, size = 0xc000, scoped, tag = 'input window, operand 7, single buffered']
    #allocation12 [shape = 's32[1]{0}', space=sflag, size = 0x4, scoped, tag = 'scoped memory for tpu_custom_call.1']
    #allocation13 [shape = 'u8[49152]{0}', space=vmem, size = 0xc000, scoped, tag = 'input window, operand 9, single buffered']
    #allocation14 [shape = 'u8[16384]{0}', space=vmem, size = 0x4000, scoped, tag = 'input window, operand 13, single buffered']
    #allocation15 [shape = 's32[1]{0}', space=sflag, size = 0x4, scoped, tag = 'scoped memory for tpu_custom_call.1']
    #allocation16 [shape = 'u8[1024]{0}', space=vmem, size = 0x400, scoped, tag = 'output window, operand 0, single buffered']
    %19 = vsyncpa [#allocation3], 0
    %20 = vsyncpa [#allocation6], 0
    %21 = vsyncpa [#allocation9], 0
    %22 = vsyncpa [#allocation12], 0
    %23 = vsyncpa [#allocation15], 0
    %24 = vsyncpa [#allocation4], 0
    // Predicated region
    $region2: #{tpu_custom_call.1} parent=1 // pred_check
      _
    $region3: #{tpu_custom_call.1} parent=1 // pred_check_branch
      %26 = sbr.rel (0) target = $region5
    $region4: #{tpu_custom_call.1} parent=1 // pred_region
      %28 = vsyncadd [#allocation3], 0
      %s30 = sshll.u32 %s0, 4
      %s31 = int_to_ptr.hbm [resolvable:$true] %s30
      %s32 = sshll.u32 [#allocation2], 4
      %s33 = int_to_ptr.vmem [resolvable:$true] %s32
      %35 = dma.hbm_to_vmem [thread:$0]  %s31, 32, %s33, [#allocation3]
    $region5: #{tpu_custom_call.1} parent=1 // pred_fallthru
      _
    // Predicated region
    $region6: #{tpu_custom_call.1} parent=1 // pred_check
      _
    $region7: #{tpu_custom_call.1} parent=1 // pred_check_branch
      %37 = sbr.rel (0) target = $region9
    $region8: #{tpu_custom_call.1} parent=1 // pred_region
      %39 = vsyncadd [#allocation6], 0
      %s41 = sshll.u32 %s1, 4
      %s42 = int_to_ptr.hbm [resolvable:$true] %s41
      %s43 = sshll.u32 [#allocation5], 4
      %s44 = int_to_ptr.vmem [resolvable:$true] %s43
      %46 = dma.hbm_to_vmem [thread:$0]  %s42, 32, %s44, [#allocation6]
    $region9: #{tpu_custom_call.1} parent=1 // pred_fallthru
      _
    // Predicated region
    $region10: #{tpu_custom_call.1} parent=1 // pred_check
      _
    $region11: #{tpu_custom_call.1} parent=1 // pred_check_branch
      %48 = sbr.rel (0) target = $region13
    $region12: #{tpu_custom_call.1} parent=1 // pred_region
      %50 = vsyncadd [#allocation6], 0
      %s52 = sshll.u32 %s2, 4
      %s53 = int_to_ptr.hbm [resolvable:$true] %s52
      %s54 = sshll.u32 [#allocation7], 4
      %s55 = int_to_ptr.vmem [resolvable:$true] %s54
      %57 = dma.hbm_to_vmem [thread:$0]  %s53, 32, %s55, [#allocation6]
    $region13: #{tpu_custom_call.1} parent=1 // pred_fallthru
      _
    // Predicated region
    $region14: #{tpu_custom_call.1} parent=1 // pred_check
      _
    $region15: #{tpu_custom_call.1} parent=1 // pred_check_branch
      %59 = sbr.rel (0) target = $region17
    $region16: #{tpu_custom_call.1} parent=1 // pred_region
      %61 = vsyncadd [#allocation9], 0
      %s62 = sshll.u32 %s3, 4
      %s63 = int_to_ptr.hbm [resolvable:$true] %s62
      %s64 = sshll.u32 [#allocation8], 4
      %s65 = int_to_ptr.vmem [resolvable:$true] %s64
      %70 = dma.hbm_to_vmem [thread:$0]  %s63, 512, %s65, [#allocation9], 128, 128, 8
    $region17: #{tpu_custom_call.1} parent=1 // pred_fallthru
      _
    // Predicated region
    $region18: #{tpu_custom_call.1} parent=1 // pred_check
      _
    $region19: #{tpu_custom_call.1} parent=1 // pred_check_branch
      %72 = sbr.rel (0) target = $region21
    $region20: #{tpu_custom_call.1} parent=1 // pred_region
      _
    $region21: #{tpu_custom_call.1} parent=1 // pred_fallthru
      _
    // Predicated region
    $region22: #{tpu_custom_call.1} parent=1 // pred_check
      _
    $region23: #{tpu_custom_call.1} parent=1 // pred_check_branch
      %74 = sbr.rel (0) target = $region25
    $region24: #{tpu_custom_call.1} parent=1 // pred_region
      %76 = vsyncadd [#allocation9], 0
      %s77 = sshll.u32 %s5, 4
      %s78 = int_to_ptr.hbm [resolvable:$true] %s77
      %s79 = sshll.u32 [#allocation10], 4
      %s80 = int_to_ptr.vmem [resolvable:$true] %s79
      %85 = dma.hbm_to_vmem [thread:$0]  %s78, 512, %s80, [#allocation9], 128, 128, 8
    $region25: #{tpu_custom_call.1} parent=1 // pred_fallthru
      _
    // Predicated region
    $region26: #{tpu_custom_call.1} parent=1 // pred_check
      _
    $region27: #{tpu_custom_call.1} parent=1 // pred_check_branch
      %87 = sbr.rel (0) target = $region29
    $region28: #{tpu_custom_call.1} parent=1 // pred_region
      _
    $region29: #{tpu_custom_call.1} parent=1 // pred_fallthru
      _
    // Predicated region
    $region30: #{tpu_custom_call.1} parent=1 // pred_check
      _
    $region31: #{tpu_custom_call.1} parent=1 // pred_check_branch
      %89 = sbr.rel (0) target = $region33
    $region32: #{tpu_custom_call.1} parent=1 // pred_region
      %91 = vsyncadd [#allocation12], 0
      %s92 = sshll.u32 %s7, 4
      %s93 = int_to_ptr.hbm [resolvable:$true] %s92
      %s94 = sshll.u32 [#allocation11], 4
      %s95 = int_to_ptr.vmem [resolvable:$true] %s94
      %100 = dma.hbm_to_vmem [thread:$0]  %s93, 1536, %s95, [#allocation12], 128, 128, 8
    $region33: #{tpu_custom_call.1} parent=1 // pred_fallthru
      _
    // Predicated region
    $region34: #{tpu_custom_call.1} parent=1 // pred_check
      _
    $region35: #{tpu_custom_call.1} parent=1 // pred_check_branch
      %102 = sbr.rel (0) target = $region37
    $region36: #{tpu_custom_call.1} parent=1 // pred_region
      _
    $region37: #{tpu_custom_call.1} parent=1 // pred_fallthru
      _
    // Predicated region
    $region38: #{tpu_custom_call.1} parent=1 // pred_check
      _
    $region39: #{tpu_custom_call.1} parent=1 // pred_check_branch
      %104 = sbr.rel (0) target = $region41
    $region40: #{tpu_custom_call.1} parent=1 // pred_region
      %106 = vsyncadd [#allocation12], 0
      %s107 = sshll.u32 %s9, 4
      %s108 = int_to_ptr.hbm [resolvable:$true] %s107
      %s109 = sshll.u32 [#allocation13], 4
      %s110 = int_to_ptr.vmem [resolvable:$true] %s109
      %115 = dma.hbm_to_vmem [thread:$0]  %s108, 1536, %s110, [#allocation12], 128, 128, 8
    $region41: #{tpu_custom_call.1} parent=1 // pred_fallthru
      _
    // Predicated region
    $region42: #{tpu_custom_call.1} parent=1 // pred_check
      _
    $region43: #{tpu_custom_call.1} parent=1 // pred_check_branch
      %117 = sbr.rel (0) target = $region45
    $region44: #{tpu_custom_call.1} parent=1 // pred_region
      _
    $region45: #{tpu_custom_call.1} parent=1 // pred_fallthru
      _
    // Predicated region
    $region46: #{tpu_custom_call.1} parent=1 // pred_check
      _
    $region47: #{tpu_custom_call.1} parent=1 // pred_check_branch
      %119 = sbr.rel (0) target = $region49
    $region48: #{tpu_custom_call.1} parent=1 // pred_region
      _
    $region49: #{tpu_custom_call.1} parent=1 // pred_fallthru
      _
    // Predicated region
    $region50: #{tpu_custom_call.1} parent=1 // pred_check
      _
    $region51: #{tpu_custom_call.1} parent=1 // pred_check_branch
      %121 = sbr.rel (0) target = $region53
    $region52: #{tpu_custom_call.1} parent=1 // pred_region
      _
    $region53: #{tpu_custom_call.1} parent=1 // pred_fallthru
      _
    // Predicated region
    $region54: #{tpu_custom_call.1} parent=1 // pred_check
      _
    $region55: #{tpu_custom_call.1} parent=1 // pred_check_branch
      %123 = sbr.rel (0) target = $region57
    $region56: #{tpu_custom_call.1} parent=1 // pred_region
      %125 = vsyncadd [#allocation15], 0
      %s126 = sshll.u32 %s13, 4
      %s127 = int_to_ptr.hbm [resolvable:$true] %s126
      %s128 = sshll.u32 [#allocation14], 4
      %s129 = int_to_ptr.vmem [resolvable:$true] %s128
      %134 = dma.hbm_to_vmem [thread:$0]  %s127, 512, %s129, [#allocation15], 128, 128, 8
    $region57: #{tpu_custom_call.1} parent=1 // pred_fallthru
      _
    // Predicated region
    $region58: #{tpu_custom_call.1} parent=1 // pred_check
      _
    $region59: #{tpu_custom_call.1} parent=1 // pred_check_branch
      %136 = sbr.rel (0) target = $region61
    $region60: #{tpu_custom_call.1} parent=1 // pred_region
      %138 = dma.done [#allocation3], 32
    $region61: #{tpu_custom_call.1} parent=1 // pred_fallthru
      _
    // Predicated region
    $region62: #{tpu_custom_call.1} parent=1 // pred_check
      _
    $region63: #{tpu_custom_call.1} parent=1 // pred_check_branch
      %140 = sbr.rel (0) target = $region65
    $region64: #{tpu_custom_call.1} parent=1 // pred_region
      %142 = dma.done [#allocation6], 32
    $region65: #{tpu_custom_call.1} parent=1 // pred_fallthru
      _
    // Predicated region
    $region66: #{tpu_custom_call.1} parent=1 // pred_check
      _
    $region67: #{tpu_custom_call.1} parent=1 // pred_check_branch
      %144 = sbr.rel (0) target = $region69
    $region68: #{tpu_custom_call.1} parent=1 // pred_region
      %146 = dma.done [#allocation6], 32
    $region69: #{tpu_custom_call.1} parent=1 // pred_fallthru
      _
    // Predicated region
    $region70: #{tpu_custom_call.1} parent=1 // pred_check
      _
    $region71: #{tpu_custom_call.1} parent=1 // pred_check_branch
      %148 = sbr.rel (0) target = $region73
    $region72: #{tpu_custom_call.1} parent=1 // pred_region
      %150 = dma.done [#allocation9], 512
    $region73: #{tpu_custom_call.1} parent=1 // pred_fallthru
      _
    // Predicated region
    $region74: #{tpu_custom_call.1} parent=1 // pred_check
      _
    $region75: #{tpu_custom_call.1} parent=1 // pred_check_branch
      %152 = sbr.rel (0) target = $region77
    $region76: #{tpu_custom_call.1} parent=1 // pred_region
      %154 = dma.done [#allocation9], 512
    $region77: #{tpu_custom_call.1} parent=1 // pred_fallthru
      _
    // Predicated region
    $region78: #{tpu_custom_call.1} parent=1 // pred_check
      _
    $region79: #{tpu_custom_call.1} parent=1 // pred_check_branch
      %156 = sbr.rel (0) target = $region81
    $region80: #{tpu_custom_call.1} parent=1 // pred_region
      %158 = dma.done [#allocation12], 1536
    $region81: #{tpu_custom_call.1} parent=1 // pred_fallthru
      _
    // Predicated region
    $region82: #{tpu_custom_call.1} parent=1 // pred_check
      _
    $region83: #{tpu_custom_call.1} parent=1 // pred_check_branch
      %160 = sbr.rel (0) target = $region85
    $region84: #{tpu_custom_call.1} parent=1 // pred_region
      %162 = dma.done [#allocation12], 1536
    $region85: #{tpu_custom_call.1} parent=1 // pred_fallthru
      _
    // Predicated region
    $region86: #{tpu_custom_call.1} parent=1 // pred_check
      _
    $region87: #{tpu_custom_call.1} parent=1 // pred_check_branch
      %164 = sbr.rel (0) target = $region89
    $region88: #{tpu_custom_call.1} parent=1 // pred_region
      %166 = dma.done [#allocation15], 512
    $region89: #{tpu_custom_call.1} parent=1 // pred_fallthru
      _
    %v167 = vld [vmem:[#allocation8] sm:$0xff]
    %v168 = vld [vmem:[#allocation8 + $0x8] sm:$0xff]
    %v169 = vld [vmem:[#allocation8 + $0x10] sm:$0xff]
    %v170 = vld [vmem:[#allocation8 + $0x18] sm:$0xff]
    %v171 = vld [vmem:[%s4] sm:$0x1]
    %v172 = vld [vmem:[#allocation14] sm:$0xff]
    %v173 = vld [vmem:[#allocation14 + $0x8] sm:$0xff]
    %v174 = vld [vmem:[#allocation14 + $0x10] sm:$0xff]
    %v175 = vld [vmem:[#allocation14 + $0x18] sm:$0xff]
    %v176 = vld [vmem:[#allocation2] sm:$0x3]
    %v178 = vperm.slane %v171, 0
    %vm180 = vcmask 261120
    %v182 = vsel %vm180, %v176, 0
    %184 = vmatpush.msra.mxu0 0.0
    %185 = vmatpush.msra.mxu0 0.0
    %186 = vmatpush.msra.mxu0 0.0
    %187 = vmatpush.msra.mxu0 0.0
    %188 = vmatpush.msra.mxu0 0.0
    %189 = vmatpush.msra.mxu0 0.0
    %190 = vmatpush.msra.mxu0 0.0
    %191 = vmatpush.msra.mxu0 0.0
    %192 = vmatpush.msra.mxu0 0.0
    %193 = vmatpush.msra.mxu0 0.0
    %194 = vmatpush.msra.mxu0 0.0
    %195 = vmatpush.msra.mxu0 0.0
    %196 = vmatpush.msra.mxu0 %v170
    %197 = vmatpush.msra.mxu0 %v169
    %198 = vmatpush.msra.mxu0 %v168
    %199 = vmatpush.msra.mxu0 %v167
    %200 = vmatmul.f32.gmra.mxu0 %v182
    %v201 = vpop.f32.mrf.mxu0
    %v202 = vadd.f32 %v178, %v201
    %203 = vdwg.mxu0
    %v204 = vld [vmem:[#allocation5] sm:$0x3]
    %v206 = vsel %vm180, %v204, 0
    %208 = vmatpush.msra.mxu0 0.0
    %209 = vmatpush.msra.mxu0 0.0
    %210 = vmatpush.msra.mxu0 0.0
    %211 = vmatpush.msra.mxu0 0.0
    %212 = vmatpush.msra.mxu0 0.0
    %213 = vmatpush.msra.mxu0 0.0
    %214 = vmatpush.msra.mxu0 0.0
    %215 = vmatpush.msra.mxu0 0.0
    %216 = vmatpush.msra.mxu0 0.0
    %217 = vmatpush.msra.mxu0 0.0
    %218 = vmatpush.msra.mxu0 0.0
    %219 = vmatpush.msra.mxu0 0.0
    %220 = vmatpush.msra.mxu0 %v170
    %221 = vmatpush.msra.mxu0 %v169
    %222 = vmatpush.msra.mxu0 %v168
    %223 = vmatpush.msra.mxu0 %v167
    %224 = vmatmul.f32.gmra.mxu0 %v206
    %v225 = vpop.f32.mrf.mxu0
    %v226 = vadd.f32 %v178, %v225
    %227 = vdwg.mxu0
    %v228 = vld [vmem:[#allocation7] sm:$0x3]
    %v230 = vsel %vm180, %v228, 0
    %232 = vmatpush.msra.mxu0 0.0
    %233 = vmatpush.msra.mxu0 0.0
    %234 = vmatpush.msra.mxu0 0.0
    %235 = vmatpush.msra.mxu0 0.0
    %236 = vmatpush.msra.mxu0 0.0
    %237 = vmatpush.msra.mxu0 0.0
    %238 = vmatpush.msra.mxu0 0.0
    %239 = vmatpush.msra.mxu0 0.0
    %240 = vmatpush.msra.mxu0 0.0
    %241 = vmatpush.msra.mxu0 0.0
    %242 = vmatpush.msra.mxu0 0.0
    %243 = vmatpush.msra.mxu0 0.0
    %244 = vmatpush.msra.mxu0 %v170
    %245 = vmatpush.msra.mxu0 %v169
    %246 = vmatpush.msra.mxu0 %v168
    %247 = vmatpush.msra.mxu0 %v167
    %248 = vmatmul.f32.gmra.mxu0 %v230
    %v249 = vpop.f32.mrf.mxu0
    %v250 = vadd.f32 %v178, %v249
    %251 = vdwg.mxu0
    %253 = vrot.lane.b32.xlu0 %v202, 96
    %v254 = vpop.permute.xlu0 %253
    %v256 = vmul.f32 %v202, %v254
    %v258 = vsel %vm180, %v256, 0
    %260 = vmatpush.msra.mxu0 0.0
    %261 = vmatpush.msra.mxu0 0.0
    %262 = vmatpush.msra.mxu0 0.0
    %263 = vmatpush.msra.mxu0 0.0
    %264 = vmatpush.msra.mxu0 0.0
    %265 = vmatpush.msra.mxu0 0.0
    %266 = vmatpush.msra.mxu0 0.0
    %267 = vmatpush.msra.mxu0 0.0
    %268 = vmatpush.msra.mxu0 0.0
    %269 = vmatpush.msra.mxu0 0.0
    %270 = vmatpush.msra.mxu0 0.0
    %271 = vmatpush.msra.mxu0 0.0
    %272 = vmatpush.msra.mxu0 %v175
    %273 = vmatpush.msra.mxu0 %v174
    %274 = vmatpush.msra.mxu0 %v173
    %275 = vmatpush.msra.mxu0 %v172
    %276 = vmatmul.f32.gmra.mxu0 %v258
    %v277 = vpop.f32.mrf.mxu0
    %v278 = vadd.f32 0.0, %v277
    %279 = vdwg.mxu0
    %281 = vrot.lane.b32.xlu0 %v226, 96
    %v282 = vpop.permute.xlu0 %281
    %v284 = vmul.f32 %v202, %v282
    %v286 = vsel %vm180, %v284, 0
    %288 = vmatpush.msra.mxu0 0.0
    %289 = vmatpush.msra.mxu0 0.0
    %290 = vmatpush.msra.mxu0 0.0
    %291 = vmatpush.msra.mxu0 0.0
    %292 = vmatpush.msra.mxu0 0.0
    %293 = vmatpush.msra.mxu0 0.0
    %294 = vmatpush.msra.mxu0 0.0
    %295 = vmatpush.msra.mxu0 0.0
    %296 = vmatpush.msra.mxu0 0.0
    %297 = vmatpush.msra.mxu0 0.0
    %298 = vmatpush.msra.mxu0 0.0
    %299 = vmatpush.msra.mxu0 0.0
    %300 = vmatpush.msra.mxu0 %v175
    %301 = vmatpush.msra.mxu0 %v174
    %302 = vmatpush.msra.mxu0 %v173
    %303 = vmatpush.msra.mxu0 %v172
    %304 = vmatmul.f32.gmra.mxu0 %v286
    %v305 = vpop.f32.mrf.mxu0
    %v306 = vadd.f32 0.0, %v305
    %307 = vdwg.mxu0
    %309 = vrot.lane.b32.xlu0 %v250, 96
    %v310 = vpop.permute.xlu0 %309
    %v312 = vmul.f32 %v202, %v310
    %v314 = vsel %vm180, %v312, 0
    %316 = vmatpush.msra.mxu0 0.0
    %317 = vmatpush.msra.mxu0 0.0
    %318 = vmatpush.msra.mxu0 0.0
    %319 = vmatpush.msra.mxu0 0.0
    %320 = vmatpush.msra.mxu0 0.0
    %321 = vmatpush.msra.mxu0 0.0
    %322 = vmatpush.msra.mxu0 0.0
    %323 = vmatpush.msra.mxu0 0.0
    %324 = vmatpush.msra.mxu0 0.0
    %325 = vmatpush.msra.mxu0 0.0
    %326 = vmatpush.msra.mxu0 0.0
    %327 = vmatpush.msra.mxu0 0.0
    %328 = vmatpush.msra.mxu0 %v175
    %329 = vmatpush.msra.mxu0 %v174
    %330 = vmatpush.msra.mxu0 %v173
    %331 = vmatpush.msra.mxu0 %v172
    %332 = vmatmul.f32.gmra.mxu0 %v314
    %v333 = vpop.f32.mrf.mxu0
    %v334 = vadd.f32 0.0, %v333
    %335 = vdwg.mxu0
    %v336 = vmul.f32 %v226, %v254
    %v338 = vsel %vm180, %v336, 0
    %340 = vmatpush.msra.mxu0 0.0
    %341 = vmatpush.msra.mxu0 0.0
    %342 = vmatpush.msra.mxu0 0.0
    %343 = vmatpush.msra.mxu0 0.0
    %344 = vmatpush.msra.mxu0 0.0
    %345 = vmatpush.msra.mxu0 0.0
    %346 = vmatpush.msra.mxu0 0.0
    %347 = vmatpush.msra.mxu0 0.0
    %348 = vmatpush.msra.mxu0 0.0
    %349 = vmatpush.msra.mxu0 0.0
    %350 = vmatpush.msra.mxu0 0.0
    %351 = vmatpush.msra.mxu0 0.0
    %352 = vmatpush.msra.mxu0 %v175
    %353 = vmatpush.msra.mxu0 %v174
    %354 = vmatpush.msra.mxu0 %v173
    %355 = vmatpush.msra.mxu0 %v172
    %356 = vmatmul.f32.gmra.mxu0 %v338
    %v357 = vpop.f32.mrf.mxu0
    %v358 = vadd.f32 0.0, %v357
    %359 = vdwg.mxu0
    %v360 = vmul.f32 %v226, %v282
    %v362 = vsel %vm180, %v360, 0
    %364 = vmatpush.msra.mxu0 0.0
    %365 = vmatpush.msra.mxu0 0.0
    %366 = vmatpush.msra.mxu0 0.0
    %367 = vmatpush.msra.mxu0 0.0
    %368 = vmatpush.msra.mxu0 0.0
    %369 = vmatpush.msra.mxu0 0.0
    %370 = vmatpush.msra.mxu0 0.0
    %371 = vmatpush.msra.mxu0 0.0
    %372 = vmatpush.msra.mxu0 0.0
    %373 = vmatpush.msra.mxu0 0.0
    %374 = vmatpush.msra.mxu0 0.0
    %375 = vmatpush.msra.mxu0 0.0
    %376 = vmatpush.msra.mxu0 %v175
    %377 = vmatpush.msra.mxu0 %v174
    %378 = vmatpush.msra.mxu0 %v173
    %379 = vmatpush.msra.mxu0 %v172
    %380 = vmatmul.f32.gmra.mxu0 %v362
    %v381 = vpop.f32.mrf.mxu0
    %v382 = vadd.f32 0.0, %v381
    %383 = vdwg.mxu0
    %v384 = vmul.f32 %v226, %v310
    %v386 = vsel %vm180, %v384, 0
    %388 = vmatpush.msra.mxu0 0.0
    %389 = vmatpush.msra.mxu0 0.0
    %390 = vmatpush.msra.mxu0 0.0
    %391 = vmatpush.msra.mxu0 0.0
    %392 = vmatpush.msra.mxu0 0.0
    %393 = vmatpush.msra.mxu0 0.0
    %394 = vmatpush.msra.mxu0 0.0
    %395 = vmatpush.msra.mxu0 0.0
    %396 = vmatpush.msra.mxu0 0.0
    %397 = vmatpush.msra.mxu0 0.0
    %398 = vmatpush.msra.mxu0 0.0
    %399 = vmatpush.msra.mxu0 0.0
    %400 = vmatpush.msra.mxu0 %v175
    %401 = vmatpush.msra.mxu0 %v174
    %402 = vmatpush.msra.mxu0 %v173
    %403 = vmatpush.msra.mxu0 %v172
    %404 = vmatmul.f32.gmra.mxu0 %v386
    %v405 = vpop.f32.mrf.mxu0
    %v406 = vadd.f32 0.0, %v405
    %407 = vdwg.mxu0
    %v408 = vmul.f32 %v250, %v254
    %v410 = vsel %vm180, %v408, 0
    %412 = vmatpush.msra.mxu0 0.0
    %413 = vmatpush.msra.mxu0 0.0
    %414 = vmatpush.msra.mxu0 0.0
    %415 = vmatpush.msra.mxu0 0.0
    %416 = vmatpush.msra.mxu0 0.0
    %417 = vmatpush.msra.mxu0 0.0
    %418 = vmatpush.msra.mxu0 0.0
    %419 = vmatpush.msra.mxu0 0.0
    %420 = vmatpush.msra.mxu0 0.0
    %421 = vmatpush.msra.mxu0 0.0
    %422 = vmatpush.msra.mxu0 0.0
    %423 = vmatpush.msra.mxu0 0.0
    %424 = vmatpush.msra.mxu0 %v175
    %425 = vmatpush.msra.mxu0 %v174
    %426 = vmatpush.msra.mxu0 %v173
    %427 = vmatpush.msra.mxu0 %v172
    %428 = vmatmul.f32.gmra.mxu0 %v410
    %v429 = vpop.f32.mrf.mxu0
    %v430 = vadd.f32 0.0, %v429
    %431 = vdwg.mxu0
    %v432 = vmul.f32 %v250, %v282
    %v434 = vsel %vm180, %v432, 0
    %436 = vmatpush.msra.mxu0 0.0
    %437 = vmatpush.msra.mxu0 0.0
    %438 = vmatpush.msra.mxu0 0.0
    %439 = vmatpush.msra.mxu0 0.0
    %440 = vmatpush.msra.mxu0 0.0
    %441 = vmatpush.msra.mxu0 0.0
    %442 = vmatpush.msra.mxu0 0.0
    %443 = vmatpush.msra.mxu0 0.0
    %444 = vmatpush.msra.mxu0 0.0
    %445 = vmatpush.msra.mxu0 0.0
    %446 = vmatpush.msra.mxu0 0.0
    %447 = vmatpush.msra.mxu0 0.0
    %448 = vmatpush.msra.mxu0 %v175
    %449 = vmatpush.msra.mxu0 %v174
    %450 = vmatpush.msra.mxu0 %v173
    %451 = vmatpush.msra.mxu0 %v172
    %452 = vmatmul.f32.gmra.mxu0 %v434
    %v453 = vpop.f32.mrf.mxu0
    %v454 = vadd.f32 0.0, %v453
    %455 = vdwg.mxu0
    %v456 = vmul.f32 %v250, %v310
    %v458 = vsel %vm180, %v456, 0
    %460 = vmatpush.msra.mxu0 0.0
    %461 = vmatpush.msra.mxu0 0.0
    %462 = vmatpush.msra.mxu0 0.0
    %463 = vmatpush.msra.mxu0 0.0
    %464 = vmatpush.msra.mxu0 0.0
    %465 = vmatpush.msra.mxu0 0.0
    %466 = vmatpush.msra.mxu0 0.0
    %467 = vmatpush.msra.mxu0 0.0
    %468 = vmatpush.msra.mxu0 0.0
    %469 = vmatpush.msra.mxu0 0.0
    %470 = vmatpush.msra.mxu0 0.0
    %471 = vmatpush.msra.mxu0 0.0
    %472 = vmatpush.msra.mxu0 %v175
    %473 = vmatpush.msra.mxu0 %v174
    %474 = vmatpush.msra.mxu0 %v173
    %475 = vmatpush.msra.mxu0 %v172
    %476 = vmatmul.f32.gmra.mxu0 %v458
    %v477 = vpop.f32.mrf.mxu0
    %v478 = vadd.f32 0.0, %v477
    %479 = vdwg.mxu0
    %v480 = vld [vmem:[#allocation10] sm:$0xff]
    %v481 = vld [vmem:[#allocation10 + $0x8] sm:$0xff]
    %v482 = vld [vmem:[#allocation10 + $0x10] sm:$0xff]
    %v483 = vld [vmem:[#allocation10 + $0x18] sm:$0xff]
    %v484 = vld [vmem:[%s6] sm:$0x1]
    %v485 = vmax.f32 %v278, %v306
    %v486 = vmax.f32 %v485, %v334
    %v487 = vsub.f32 %v278, %v486
    %v488 = vmul.f32 %v487, 1.442695
    %v489 = vpow.pop %v488
    %v490 = vsub.f32 %v306, %v486
    %v491 = vmul.f32 %v490, 1.442695
    %v492 = vpow.pop %v491
    %v493 = vsub.f32 %v334, %v486
    %v494 = vmul.f32 %v493, 1.442695
    %v495 = vpow.pop %v494
    %v496 = vadd.f32 %v489, %v492
    %v497 = vadd.f32 %v496, %v495
    %498 = vrot.lane.b32.xlu0 %v202, 64
    %v499 = vpop.permute.xlu0 %498
    %v501 = vmul.f32 %v489, %v499
    %502 = vrot.lane.b32.xlu0 %v226, 64
    %v503 = vpop.permute.xlu0 %502
    %v505 = vmul.f32 %v492, %v503
    %v506 = vadd.f32 %v501, %v505
    %507 = vrot.lane.b32.xlu0 %v250, 64
    %v508 = vpop.permute.xlu0 %507
    %v510 = vmul.f32 %v495, %v508
    %v511 = vadd.f32 %v506, %v510
    %v512 = vrcp.pop %v497
    %v513 = vmul.f32 %v497, %v512
    %v514 = vsub.f32 1.0, %v513
    %v515 = vmul.f32 %v512, %v514
    %v516 = vadd.f32 %v512, %v515
    %vm517 = vweird.f32 %v497
    %vm518 = vweird.f32 %v512
    %vm519 = vmor %vm517, %vm518
    %v520 = vsel %vm519, %v512, %v516
    %v521 = vand.u32 2147483647, %v497
    %vm522 = vcmp.eq.f32.partialorder %v521, 8.507059e+37
    %v523 = vand.u32 %v497, 2147483648
    %v524 = vor.u32 1.1754944e-38, %v523
    %v525 = vsel %vm522, %v524, %v520
    %v526 = vmul.f32 %v511, %v525
    %v528 = vperm.slane %v484, 0
    %v531 = vsel %vm180, %v526, 0
    %533 = vmatpush.msra.mxu0 0.0
    %534 = vmatpush.msra.mxu0 0.0
    %535 = vmatpush.msra.mxu0 0.0
    %536 = vmatpush.msra.mxu0 0.0
    %537 = vmatpush.msra.mxu0 0.0
    %538 = vmatpush.msra.mxu0 0.0
    %539 = vmatpush.msra.mxu0 0.0
    %540 = vmatpush.msra.mxu0 0.0
    %541 = vmatpush.msra.mxu0 0.0
    %542 = vmatpush.msra.mxu0 0.0
    %543 = vmatpush.msra.mxu0 0.0
    %544 = vmatpush.msra.mxu0 0.0
    %545 = vmatpush.msra.mxu0 %v483
    %546 = vmatpush.msra.mxu0 %v482
    %547 = vmatpush.msra.mxu0 %v481
    %548 = vmatpush.msra.mxu0 %v480
    %549 = vmatmul.f32.gmra.mxu0 %v531
    %v550 = vpop.f32.mrf.mxu0
    %v551 = vadd.f32 %v528, %v550
    %552 = vdwg.mxu0
    %v553 = vmax.f32 %v358, %v382
    %v554 = vmax.f32 %v553, %v406
    %v555 = vsub.f32 %v358, %v554
    %v556 = vmul.f32 %v555, 1.442695
    %v557 = vpow.pop %v556
    %v558 = vsub.f32 %v382, %v554
    %v559 = vmul.f32 %v558, 1.442695
    %v560 = vpow.pop %v559
    %v561 = vsub.f32 %v406, %v554
    %v562 = vmul.f32 %v561, 1.442695
    %v563 = vpow.pop %v562
    %v564 = vadd.f32 %v557, %v560
    %v565 = vadd.f32 %v564, %v563
    %v566 = vmul.f32 %v557, %v499
    %v567 = vmul.f32 %v560, %v503
    %v568 = vadd.f32 %v566, %v567
    %v569 = vmul.f32 %v563, %v508
    %v570 = vadd.f32 %v568, %v569
    %v571 = vrcp.pop %v565
    %v572 = vmul.f32 %v565, %v571
    %v573 = vsub.f32 1.0, %v572
    %v574 = vmul.f32 %v571, %v573
    %v575 = vadd.f32 %v571, %v574
    %vm576 = vweird.f32 %v565
    %vm577 = vweird.f32 %v571
    %vm578 = vmor %vm576, %vm577
    %v579 = vsel %vm578, %v571, %v575
    %v580 = vand.u32 2147483647, %v565
    %vm581 = vcmp.eq.f32.partialorder %v580, 8.507059e+37
    %v582 = vand.u32 %v565, 2147483648
    %v583 = vor.u32 1.1754944e-38, %v582
    %v584 = vsel %vm581, %v583, %v579
    %v585 = vmul.f32 %v570, %v584
    %v587 = vsel %vm180, %v585, 0
    %589 = vmatpush.msra.mxu0 0.0
    %590 = vmatpush.msra.mxu0 0.0
    %591 = vmatpush.msra.mxu0 0.0
    %592 = vmatpush.msra.mxu0 0.0
    %593 = vmatpush.msra.mxu0 0.0
    %594 = vmatpush.msra.mxu0 0.0
    %595 = vmatpush.msra.mxu0 0.0
    %596 = vmatpush.msra.mxu0 0.0
    %597 = vmatpush.msra.mxu0 0.0
    %598 = vmatpush.msra.mxu0 0.0
    %599 = vmatpush.msra.mxu0 0.0
    %600 = vmatpush.msra.mxu0 0.0
    %601 = vmatpush.msra.mxu0 %v483
    %602 = vmatpush.msra.mxu0 %v482
    %603 = vmatpush.msra.mxu0 %v481
    %604 = vmatpush.msra.mxu0 %v480
    %605 = vmatmul.f32.gmra.mxu0 %v587
    %v606 = vpop.f32.mrf.mxu0
    %v607 = vadd.f32 %v528, %v606
    %608 = vdwg.mxu0
    %v609 = vmax.f32 %v430, %v454
    %v610 = vmax.f32 %v609, %v478
    %v611 = vsub.f32 %v430, %v610
    %v612 = vmul.f32 %v611, 1.442695
    %v613 = vpow.pop %v612
    %v614 = vsub.f32 %v454, %v610
    %v615 = vmul.f32 %v614, 1.442695
    %v616 = vpow.pop %v615
    %v617 = vsub.f32 %v478, %v610
    %v618 = vmul.f32 %v617, 1.442695
    %v619 = vpow.pop %v618
    %v620 = vadd.f32 %v613, %v616
    %v621 = vadd.f32 %v620, %v619
    %v622 = vmul.f32 %v613, %v499
    %v623 = vmul.f32 %v616, %v503
    %v624 = vadd.f32 %v622, %v623
    %v625 = vmul.f32 %v619, %v508
    %v626 = vadd.f32 %v624, %v625
    %v627 = vrcp.pop %v621
    %v628 = vmul.f32 %v621, %v627
    %v629 = vsub.f32 1.0, %v628
    %v630 = vmul.f32 %v627, %v629
    %v631 = vadd.f32 %v627, %v630
    %vm632 = vweird.f32 %v621
    %vm633 = vweird.f32 %v627
    %vm634 = vmor %vm632, %vm633
    %v635 = vsel %vm634, %v627, %v631
    %v636 = vand.u32 2147483647, %v621
    %vm637 = vcmp.eq.f32.partialorder %v636, 8.507059e+37
    %v638 = vand.u32 %v621, 2147483648
    %v639 = vor.u32 1.1754944e-38, %v638
    %v640 = vsel %vm637, %v639, %v635
    %v641 = vmul.f32 %v626, %v640
    %v643 = vsel %vm180, %v641, 0
    %645 = vmatpush.msra.mxu0 0.0
    %646 = vmatpush.msra.mxu0 0.0
    %647 = vmatpush.msra.mxu0 0.0
    %648 = vmatpush.msra.mxu0 0.0
    %649 = vmatpush.msra.mxu0 0.0
    %650 = vmatpush.msra.mxu0 0.0
    %651 = vmatpush.msra.mxu0 0.0
    %652 = vmatpush.msra.mxu0 0.0
    %653 = vmatpush.msra.mxu0 0.0
    %654 = vmatpush.msra.mxu0 0.0
    %655 = vmatpush.msra.mxu0 0.0
    %656 = vmatpush.msra.mxu0 0.0
    %657 = vmatpush.msra.mxu0 %v483
    %658 = vmatpush.msra.mxu0 %v482
    %659 = vmatpush.msra.mxu0 %v481
    %660 = vmatpush.msra.mxu0 %v480
    %661 = vmatmul.f32.gmra.mxu0 %v643
    %v662 = vpop.f32.mrf.mxu0
    %v663 = vadd.f32 %v528, %v662
    %664 = vdwg.mxu0
    %v665 = vld [vmem:[%s8] sm:$0x1]
    %v666 = vld [vmem:[#allocation11] sm:$0xff]
    %v667 = vld [vmem:[#allocation11 + $0x8] sm:$0xff]
    %v668 = vld [vmem:[#allocation11 + $0x10] sm:$0xff]
    %v669 = vld [vmem:[#allocation11 + $0x18] sm:$0xff]
    %v671 = vsel %vm180, %v551, 0
    %673 = vmatpush.msra.mxu0 0.0
    %674 = vmatpush.msra.mxu0 0.0
    %675 = vmatpush.msra.mxu0 0.0
    %676 = vmatpush.msra.mxu0 0.0
    %677 = vmatpush.msra.mxu0 0.0
    %678 = vmatpush.msra.mxu0 0.0
    %679 = vmatpush.msra.mxu0 0.0
    %680 = vmatpush.msra.mxu0 0.0
    %681 = vmatpush.msra.mxu0 0.0
    %682 = vmatpush.msra.mxu0 0.0
    %683 = vmatpush.msra.mxu0 0.0
    %684 = vmatpush.msra.mxu0 0.0
    %685 = vmatpush.msra.mxu0 %v669
    %686 = vmatpush.msra.mxu0 %v668
    %687 = vmatpush.msra.mxu0 %v667
    %688 = vmatpush.msra.mxu0 %v666
    %689 = vmatmul.f32.gmra.mxu0 %v671
    %v690 = vpop.f32.mrf.mxu0
    %v691 = vadd.f32 0.0, %v690
    %692 = vdwg.mxu0
    %v694 = vperm.slane %v665, 0
    %v696 = vadd.f32 %v694, %v691
    %s697 = scalar_lea.vmem [#allocation11], 32
    %v698 = vld [vmem:[%s697] sm:$0xff]
    %v699 = vld [vmem:[%s697 + $0x8] sm:$0xff]
    %v700 = vld [vmem:[%s697 + $0x10] sm:$0xff]
    %v701 = vld [vmem:[%s697 + $0x18] sm:$0xff]
    %v703 = vsel %vm180, %v607, 0
    %705 = vmatpush.msra.mxu0 0.0
    %706 = vmatpush.msra.mxu0 0.0
    %707 = vmatpush.msra.mxu0 0.0
    %708 = vmatpush.msra.mxu0 0.0
    %709 = vmatpush.msra.mxu0 0.0
    %710 = vmatpush.msra.mxu0 0.0
    %711 = vmatpush.msra.mxu0 0.0
    %712 = vmatpush.msra.mxu0 0.0
    %713 = vmatpush.msra.mxu0 0.0
    %714 = vmatpush.msra.mxu0 0.0
    %715 = vmatpush.msra.mxu0 0.0
    %716 = vmatpush.msra.mxu0 0.0
    %717 = vmatpush.msra.mxu0 %v701
    %718 = vmatpush.msra.mxu0 %v700
    %719 = vmatpush.msra.mxu0 %v699
    %720 = vmatpush.msra.mxu0 %v698
    %721 = vmatmul.f32.gmra.mxu0 %v703
    %v722 = vpop.f32.mrf.mxu0
    %v723 = vadd.f32 0.0, %v722
    %724 = vdwg.mxu0
    %v725 = vadd.f32 %v696, %v723
    %s726 = scalar_lea.vmem [#allocation11], 64
    %v727 = vld [vmem:[%s726] sm:$0xff]
    %v728 = vld [vmem:[%s726 + $0x8] sm:$0xff]
    %v729 = vld [vmem:[%s726 + $0x10] sm:$0xff]
    %v730 = vld [vmem:[%s726 + $0x18] sm:$0xff]
    %v732 = vsel %vm180, %v663, 0
    %734 = vmatpush.msra.mxu0 0.0
    %735 = vmatpush.msra.mxu0 0.0
    %736 = vmatpush.msra.mxu0 0.0
    %737 = vmatpush.msra.mxu0 0.0
    %738 = vmatpush.msra.mxu0 0.0
    %739 = vmatpush.msra.mxu0 0.0
    %740 = vmatpush.msra.mxu0 0.0
    %741 = vmatpush.msra.mxu0 0.0
    %742 = vmatpush.msra.mxu0 0.0
    %743 = vmatpush.msra.mxu0 0.0
    %744 = vmatpush.msra.mxu0 0.0
    %745 = vmatpush.msra.mxu0 0.0
    %746 = vmatpush.msra.mxu0 %v730
    %747 = vmatpush.msra.mxu0 %v729
    %748 = vmatpush.msra.mxu0 %v728
    %749 = vmatpush.msra.mxu0 %v727
    %750 = vmatmul.f32.gmra.mxu0 %v732
    %v751 = vpop.f32.mrf.mxu0
    %v752 = vadd.f32 0.0, %v751
    %753 = vdwg.mxu0
    %v754 = vadd.f32 %v725, %v752
    %v755 = vxor.u32 %v754, 2147483648
    %v756 = vmul.f32 %v755, 1.442695
    %v757 = vpow.pop %v756
    %v758 = vadd.f32 %v757, 1.0
    %v759 = vrcp.pop %v758
    %v760 = vmul.f32 %v758, %v759
    %v761 = vsub.f32 1.0, %v760
    %v762 = vmul.f32 %v759, %v761
    %v763 = vadd.f32 %v759, %v762
    %vm764 = vweird.f32 %v758
    %vm765 = vweird.f32 %v759
    %vm766 = vmor %vm764, %vm765
    %v767 = vsel %vm766, %v759, %v763
    %v768 = vand.u32 2147483647, %v758
    %vm769 = vcmp.eq.f32.partialorder %v768, 8.507059e+37
    %v770 = vand.u32 %v758, 2147483648
    %v771 = vor.u32 1.1754944e-38, %v770
    %v772 = vsel %vm769, %v771, %v767
    %v773 = vmul.f32 1.0, %v772
    %v774 = vld [vmem:[%s10] sm:$0x1]
    %v775 = vmul.f32 %v773, %v551
    %v776 = vld [vmem:[#allocation13] sm:$0xff]
    %v777 = vld [vmem:[#allocation13 + $0x8] sm:$0xff]
    %v778 = vld [vmem:[#allocation13 + $0x10] sm:$0xff]
    %v779 = vld [vmem:[#allocation13 + $0x18] sm:$0xff]
    %v781 = vsel %vm180, %v775, 0
    %783 = vmatpush.msra.mxu0 0.0
    %784 = vmatpush.msra.mxu0 0.0
    %785 = vmatpush.msra.mxu0 0.0
    %786 = vmatpush.msra.mxu0 0.0
    %787 = vmatpush.msra.mxu0 0.0
    %788 = vmatpush.msra.mxu0 0.0
    %789 = vmatpush.msra.mxu0 0.0
    %790 = vmatpush.msra.mxu0 0.0
    %791 = vmatpush.msra.mxu0 0.0
    %792 = vmatpush.msra.mxu0 0.0
    %793 = vmatpush.msra.mxu0 0.0
    %794 = vmatpush.msra.mxu0 0.0
    %795 = vmatpush.msra.mxu0 %v779
    %796 = vmatpush.msra.mxu0 %v778
    %797 = vmatpush.msra.mxu0 %v777
    %798 = vmatpush.msra.mxu0 %v776
    %799 = vmatmul.f32.gmra.mxu0 %v781
    %v800 = vpop.f32.mrf.mxu0
    %v801 = vadd.f32 0.0, %v800
    %802 = vdwg.mxu0
    %v804 = vperm.slane %v774, 0
    %v806 = vadd.f32 %v804, %v801
    %807 = vrot.lane.b32.xlu0 %v607, 32
    %v808 = vpop.permute.xlu0 %807
    %v810 = vmul.f32 %v773, %v808
    %s811 = scalar_lea.vmem [#allocation13], 32
    %v812 = vld [vmem:[%s811] sm:$0xff]
    %v813 = vld [vmem:[%s811 + $0x8] sm:$0xff]
    %v814 = vld [vmem:[%s811 + $0x10] sm:$0xff]
    %v815 = vld [vmem:[%s811 + $0x18] sm:$0xff]
    %817 = vrot.lane.b32.xlu0 %v810, 96
    %v818 = vpop.permute.xlu0 %817
    %v819 = vsel %vm180, %v818, 0
    %821 = vmatpush.msra.mxu0 0.0
    %822 = vmatpush.msra.mxu0 0.0
    %823 = vmatpush.msra.mxu0 0.0
    %824 = vmatpush.msra.mxu0 0.0
    %825 = vmatpush.msra.mxu0 0.0
    %826 = vmatpush.msra.mxu0 0.0
    %827 = vmatpush.msra.mxu0 0.0
    %828 = vmatpush.msra.mxu0 0.0
    %829 = vmatpush.msra.mxu0 0.0
    %830 = vmatpush.msra.mxu0 0.0
    %831 = vmatpush.msra.mxu0 0.0
    %832 = vmatpush.msra.mxu0 0.0
    %833 = vmatpush.msra.mxu0 %v815
    %834 = vmatpush.msra.mxu0 %v814
    %835 = vmatpush.msra.mxu0 %v813
    %836 = vmatpush.msra.mxu0 %v812
    %837 = vmatmul.f32.gmra.mxu0 %v819
    %v838 = vpop.f32.mrf.mxu0
    %v839 = vadd.f32 0.0, %v838
    %840 = vdwg.mxu0
    %v841 = vadd.f32 %v806, %v839
    %842 = vrot.lane.b32.xlu0 %v663, 64
    %v843 = vpop.permute.xlu0 %842
    %v845 = vmul.f32 %v773, %v843
    %s846 = scalar_lea.vmem [#allocation13], 64
    %v847 = vld [vmem:[%s846] sm:$0xff]
    %v848 = vld [vmem:[%s846 + $0x8] sm:$0xff]
    %v849 = vld [vmem:[%s846 + $0x10] sm:$0xff]
    %v850 = vld [vmem:[%s846 + $0x18] sm:$0xff]
    %852 = vrot.lane.b32.xlu0 %v845, 64
    %v853 = vpop.permute.xlu0 %852
    %v854 = vsel %vm180, %v853, 0
    %856 = vmatpush.msra.mxu0 0.0
    %857 = vmatpush.msra.mxu0 0.0
    %858 = vmatpush.msra.mxu0 0.0
    %859 = vmatpush.msra.mxu0 0.0
    %860 = vmatpush.msra.mxu0 0.0
    %861 = vmatpush.msra.mxu0 0.0
    %862 = vmatpush.msra.mxu0 0.0
    %863 = vmatpush.msra.mxu0 0.0
    %864 = vmatpush.msra.mxu0 0.0
    %865 = vmatpush.msra.mxu0 0.0
    %866 = vmatpush.msra.mxu0 0.0
    %867 = vmatpush.msra.mxu0 0.0
    %868 = vmatpush.msra.mxu0 %v850
    %869 = vmatpush.msra.mxu0 %v849
    %870 = vmatpush.msra.mxu0 %v848
    %871 = vmatpush.msra.mxu0 %v847
    %872 = vmatmul.f32.gmra.mxu0 %v854
    %v873 = vpop.f32.mrf.mxu0
    %v874 = vadd.f32 0.0, %v873
    %875 = vdwg.mxu0
    %v876 = vadd.f32 %v841, %v874
    %vm877 = vcmask 779264
    %v878 = vsel %vm877, %v876, 0.0
    %879 = vadd.xlane.f32.xlu0 %v878
    %v880 = vpop.xlane.xlu0 %879
    %v881 = vrcp.pop 96.0
    %v882 = vmul.f32 96.0, %v881
    %v883 = vsub.f32 1.0, %v882
    %v884 = vmul.f32 %v881, %v883
    %v885 = vadd.f32 %v881, %v884
    %vm886 = vweird.f32 %v881
    %v887 = vsel %vm886, %v881, %v885
    %v888 = vmul.f32 %v880, %v887
    %v889 = vsub.f32 %v876, %v888
    %v890 = vmul.f32 %v889, %v889
    %v891 = vsel %vm877, %v890, 0.0
    %892 = vadd.xlane.f32.xlu0 %v891
    %v893 = vpop.xlane.xlu0 %892
    %v894 = vmul.f32 %v893, %v887
    %v895 = vadd.f32 %v894, 1e-05
    %v896 = vrsqrt.pop %v895
    %v897 = vmul.f32 %v896, %v895
    %v898 = vmul.f32 %v897, %v896
    %v899 = vmul.f32 0.5, %v898
    %v900 = vsub.f32 1.5, %v899
    %v901 = vmul.f32 %v896, %v900
    %vm902 = vweird.f32 %v895
    %vm903 = vweird.f32 %v896
    %vm904 = vmor %vm902, %vm903
    %v905 = vsel %vm904, %v896, %v901
    %v906 = vmul.f32 %v889, %v905
    %v907 = vld [vmem:[%s11] sm:$0x1]
    %v909 = vperm.slane %v907, 0
    %v911 = vmul.f32 %v906, %v909
    %v912 = vld [vmem:[%s12] sm:$0x1]
    %v914 = vperm.slane %v912, 0
    %v916 = vadd.f32 %v911, %v914
    %v917 = vmax.f32 %v916, 0.0
    %918 = vst.msk [vmem:[#allocation16] sm:$0x3] %vm877, %v917
    // Predicated region
    $region90: #{tpu_custom_call.1} parent=1 // pred_check
      _
    $region91: #{tpu_custom_call.1} parent=1 // pred_check_branch
      %920 = sbr.rel (0) target = $region93
    $region92: #{tpu_custom_call.1} parent=1 // pred_region
      %922 = vsyncadd [#allocation4], 0
      %s924 = sshll.u32 [#allocation16], 4
      %s925 = int_to_ptr.vmem [resolvable:$true] %s924
      %s926 = sshll.u32 %s14, 4
      %s927 = int_to_ptr.hbm [resolvable:$true] %s926
      %929 = dma.vmem_to_hbm [thread:$0]  %s925, 32, %s927, [#allocation4]
    $region93: #{tpu_custom_call.1} parent=1 // pred_fallthru
      _
    // Predicated region
    $region94: #{tpu_custom_call.1} parent=1 // pred_check
      _
    $region95: #{tpu_custom_call.1} parent=1 // pred_check_branch
      %931 = sbr.rel (0) target = $region97
    $region96: #{tpu_custom_call.1} parent=1 // pred_region
      %933 = dma.done [#allocation4], 32
    $region97: #{tpu_custom_call.1} parent=1 // pred_fallthru
      _
    %934 = vsyncpa [#allocation3], 1
    %935 = vsyncpa [#allocation6], 1
    %936 = vsyncpa [#allocation9], 1
    %937 = vsyncpa [#allocation12], 1
    %938 = vsyncpa [#allocation15], 1
    %939 = vsyncpa [#allocation4], 1

</llo_original>
